<compile_context>
chip_gen: v7x
topology: tpu7x:2x2x1
jax: 0.10.0
libtpu: 0.0.40
codegen_flags: <defaults>
</compile_context>

<pallas_src>
import jax
import jax.numpy as jnp
from jax import lax
from jax.experimental import pallas as pl
from jax.experimental.pallas import tpu as pltpu

P_DROP = 0.1
EPS = 1e-12  # matches LayerNorm((768,), eps=1e-12) in the reference module


def _dropout_add_ln_kernel(x132_ref, x103_ref, mask_ref, w_ref, b_ref, out_ref):
    scale = jnp.float32(1.0 / (1.0 - P_DROP))

    # dropout + residual add, fused into a single scaled-mask multiply
    keep = mask_ref[...].astype(jnp.float32)            # {0,1}
    x132 = x132_ref[...].astype(jnp.float32)
    y = x103_ref[...].astype(jnp.float32) + x132 * (keep * scale)

    # one-pass LayerNorm statistics over the lane (H) axis
    h = y.shape[-1]
    inv_h = jnp.float32(1.0 / h)
    s1 = jnp.sum(y, axis=-1, keepdims=True)
    s2 = jnp.sum(y * y, axis=-1, keepdims=True)
    mean = s1 * inv_h
    var = jnp.maximum(s2 * inv_h - mean * mean, 0.0)
    inv = lax.rsqrt(var + EPS)

    # weight/bias loaded once per tile; (1, H) broadcasts over rows
    w = w_ref[...].astype(jnp.float32)
    b = b_ref[...].astype(jnp.float32)
    out_ref[...] = (((y - mean) * inv) * w + b).astype(out_ref.dtype)


def dropout_add_layernorm(x132, x103, weight, bias, key, *, tile_rows=192):
    B, S, H = x132.shape
    R = B * S
    assert R % tile_rows == 0, "row count must be divisible by tile_rows"

    x132_2d = x132.reshape(R, H)
    x103_2d = x103.reshape(R, H)
    w2d = weight.reshape(1, H)
    b2d = bias.reshape(1, H)

    # TODO(synk): on real TPU hardware the mask could be drawn in-kernel with
    # pltpu.prng_random_bits to save the extra HBM read; generated host-side
    # here so the kernel also lowers in CPU/interpret mode.
    keep_mask = jax.random.bernoulli(key, 1.0 - P_DROP, (R, H)).astype(jnp.int8)

    grid = (R // tile_rows,)

    out = pl.pallas_call(
        _dropout_add_ln_kernel,
        out_shape=jax.ShapeDtypeStruct((R, H), x132.dtype),
        grid_spec=pltpu.PrefetchScalarGridSpec(
            num_scalar_prefetch=0,
            grid=grid,
            in_specs=[
                pl.BlockSpec((tile_rows, H), lambda i: (i, 0)),
                pl.BlockSpec((tile_rows, H), lambda i: (i, 0)),
                pl.BlockSpec((tile_rows, H), lambda i: (i, 0)),
                pl.BlockSpec((1, H), lambda i: (0, 0)),
                pl.BlockSpec((1, H), lambda i: (0, 0)),
            ],
            out_specs=pl.BlockSpec((tile_rows, H), lambda i: (i, 0)),
        ),
        compiler_params=pltpu.CompilerParams(
            dimension_semantics=("parallel",)
        ),
    )(x132_2d, x103_2d, keep_mask, w2d, b2d)

    return out.reshape(B, S, H)


def _reference(x132, x103, weight, bias, key):
    """Pure-JAX reference using the identical dropout mask."""
    B, S, H = x132.shape
    keep = jax.random.bernoulli(key, 1.0 - P_DROP, (B * S, H)).astype(jnp.float32)
    keep = keep.reshape(B, S, H)
    y = x103 + x132 * keep * (1.0 / (1.0 - P_DROP))
    mean = jnp.mean(y, axis=-1, keepdims=True)
    var = jnp.mean((y - mean) ** 2, axis=-1, keepdims=True)
    return (y - mean) * lax.rsqrt(var + EPS) * weight + bias


if __name__ == "__main__":
    key = jax.random.PRNGKey(0)
    k1, k2, kdrop = jax.random.split(key, 3)

    B, S, H = 1, 384, 768  # matches the module: LayerNorm((768,))
    x103 = jax.random.normal(k1, (B, S, H), dtype=jnp.float32)
    x132 = jax.random.normal(k2, (B, S, H), dtype=jnp.float32)

    # PyTorch LayerNorm default init: weight=1, bias=0.
    weight = jnp.ones((H,), dtype=jnp.float32)
    bias = jnp.zeros((H,), dtype=jnp.float32)

    out = dropout_add_layernorm(x132, x103, weight, bias, kdrop)
    jax.block_until_ready(out)

    assert out.shape == (B, S, H)
    assert jnp.all(jnp.isfinite(out))

    ref = _reference(x132, x103, weight, bias, kdrop)
    assert jnp.allclose(out, ref, atol=1e-4, rtol=1e-4), float(
        jnp.max(jnp.abs(out - ref))
    )

    print("KERNEL_OK")
</pallas_src>

<mosaic_0001>
module attributes {stable_mosaic.version = 11 : i64} {
  func.func @_dropout_add_ln_kernel(%arg0: i32, %arg1: memref<192x768xf32, #tpu.memory_space<vmem>>, %arg2: memref<192x768xf32, #tpu.memory_space<vmem>>, %arg3: memref<192x768xi8, #tpu.memory_space<vmem>>, %arg4: memref<1x768xf32, #tpu.memory_space<vmem>>, %arg5: memref<1x768xf32, #tpu.memory_space<vmem>>, %arg6: memref<192x768xf32, #tpu.memory_space<vmem>>) attributes {dimension_semantics = [#tpu.dimension_semantics<parallel>], iteration_bounds = array<i64: 2>, scalar_prefetch = 0 : i64, scratch_operands = 0 : i64, tpu.core_type = #tpu.core_type<tc>, window_params = [{transform_indices = @transform_0, window_bounds = array<i64: 192, 768>}, {transform_indices = @transform_1, window_bounds = array<i64: 192, 768>}, {transform_indices = @transform_2, window_bounds = array<i64: 192, 768>}, {pipeline_mode = #tpu.pipeline_mode<synchronous>, transform_indices = @transform_3, window_bounds = array<i64: 1, 768>}, {pipeline_mode = #tpu.pipeline_mode<synchronous>, transform_indices = @transform_4, window_bounds = array<i64: 1, 768>}, {transform_indices = @transform_5, window_bounds = array<i64: 192, 768>}]} {
    %c0 = arith.constant 0 : index
    %c0_0 = arith.constant 0 : index
    %0 = vector.load %arg3[%c0, %c0_0] : memref<192x768xi8, #tpu.memory_space<vmem>>, vector<192x768xi8>
    %1 = arith.sitofp %0 : vector<192x768xi8> to vector<192x768xf32>
    %c0_1 = arith.constant 0 : index
    %c0_2 = arith.constant 0 : index
    %2 = vector.load %arg1[%c0_1, %c0_2] : memref<192x768xf32, #tpu.memory_space<vmem>>, vector<192x768xf32>
    %c0_3 = arith.constant 0 : index
    %c0_4 = arith.constant 0 : index
    %3 = vector.load %arg2[%c0_3, %c0_4] : memref<192x768xf32, #tpu.memory_space<vmem>>, vector<192x768xf32>
    %cst = arith.constant 1.11111116 : f32
    %4 = vector.broadcast %cst : f32 to vector<192x768xf32>
    %5 = arith.mulf %1, %4 : vector<192x768xf32>
    %6 = arith.mulf %2, %5 : vector<192x768xf32>
    %7 = arith.addf %3, %6 : vector<192x768xf32>
    %cst_5 = arith.constant dense<0.000000e+00> : vector<192xf32>
    %8 = vector.multi_reduction <add>, %7, %cst_5 [1] : vector<192x768xf32> to vector<192xf32>
    %9 = vector.shape_cast %8 : vector<192xf32> to vector<192x1xf32>
    %10 = arith.mulf %7, %7 : vector<192x768xf32>
    %cst_6 = arith.constant dense<0.000000e+00> : vector<192xf32>
    %11 = vector.multi_reduction <add>, %10, %cst_6 [1] : vector<192x768xf32> to vector<192xf32>
    %12 = vector.shape_cast %11 : vector<192xf32> to vector<192x1xf32>
    %cst_7 = arith.constant 0.00130208337 : f32
    %13 = vector.broadcast %cst_7 : f32 to vector<192x1xf32>
    %14 = arith.mulf %9, %13 : vector<192x1xf32>
    %cst_8 = arith.constant 0.00130208337 : f32
    %15 = vector.broadcast %cst_8 : f32 to vector<192x1xf32>
    %16 = arith.mulf %12, %15 : vector<192x1xf32>
    %17 = arith.mulf %14, %14 : vector<192x1xf32>
    %18 = arith.subf %16, %17 : vector<192x1xf32>
    %cst_9 = arith.constant 0.000000e+00 : f32
    %19 = vector.broadcast %cst_9 : f32 to vector<192x1xf32>
    %20 = arith.maximumf %18, %19 : vector<192x1xf32>
    %cst_10 = arith.constant 9.99999996E-13 : f32
    %21 = vector.broadcast %cst_10 : f32 to vector<192x1xf32>
    %22 = arith.addf %20, %21 : vector<192x1xf32>
    %23 = math.rsqrt %22 : vector<192x1xf32>
    %c0_11 = arith.constant 0 : index
    %c0_12 = arith.constant 0 : index
    %24 = vector.load %arg4[%c0_11, %c0_12] : memref<1x768xf32, #tpu.memory_space<vmem>>, vector<1x768xf32>
    %c0_13 = arith.constant 0 : index
    %c0_14 = arith.constant 0 : index
    %25 = vector.load %arg5[%c0_13, %c0_14] : memref<1x768xf32, #tpu.memory_space<vmem>>, vector<1x768xf32>
    %26 = vector.broadcast %14 : vector<192x1xf32> to vector<192x768xf32>
    %27 = arith.subf %7, %26 : vector<192x768xf32>
    %28 = vector.broadcast %23 : vector<192x1xf32> to vector<192x768xf32>
    %29 = arith.mulf %27, %28 : vector<192x768xf32>
    %30 = vector.broadcast %24 : vector<1x768xf32> to vector<192x768xf32>
    %31 = arith.mulf %29, %30 : vector<192x768xf32>
    %32 = vector.broadcast %25 : vector<1x768xf32> to vector<192x768xf32>
    %33 = arith.addf %31, %32 : vector<192x768xf32>
    %c0_15 = arith.constant 0 : index
    %c0_16 = arith.constant 0 : index
    %34 = vector.load %arg6[%c0_15, %c0_16] : memref<192x768xf32, #tpu.memory_space<vmem>>, vector<192x768xf32>
    tpu.vector_store %arg6[%c0_15, %c0_16], %33 {strides = array<i32>} : memref<192x768xf32, #tpu.memory_space<vmem>>, vector<192x768xf32>,
    return
  }
  func.func @transform_0(%arg0: i32) -> (i32, i32) {
    %c0_i32 = arith.constant 0 : i32
    %c0_i32_0 = arith.constant 0 : i32
    return %arg0, %c0_i32 : i32, i32
  }
  func.func @transform_1(%arg0: i32) -> (i32, i32) {
    %c0_i32 = arith.constant 0 : i32
    %c0_i32_0 = arith.constant 0 : i32
    return %arg0, %c0_i32 : i32, i32
  }
  func.func @transform_2(%arg0: i32) -> (i32, i32) {
    %c0_i32 = arith.constant 0 : i32
    %c0_i32_0 = arith.constant 0 : i32
    return %arg0, %c0_i32 : i32, i32
  }
  func.func @transform_3(%arg0: i32) -> (i32, i32) {
    %c0_i32 = arith.constant 0 : i32
    %c0_i32_0 = arith.constant 0 : i32
    %c0_i32_1 = arith.constant 0 : i32
    return %c0_i32, %c0_i32_0 : i32, i32
  }
  func.func @transform_4(%arg0: i32) -> (i32, i32) {
    %c0_i32 = arith.constant 0 : i32
    %c0_i32_0 = arith.constant 0 : i32
    %c0_i32_1 = arith.constant 0 : i32
    return %c0_i32, %c0_i32_0 : i32, i32
  }
  func.func @transform_5(%arg0: i32) -> (i32, i32) {
    %c0_i32 = arith.constant 0 : i32
    %c0_i32_0 = arith.constant 0 : i32
    return %arg0, %c0_i32 : i32, i32
  }
}

</mosaic_0001>

<llo_original>
// kernel: tpu_custom_call.1
$region0: #{tpu_custom_call.1}
  #allocation0 [shape = 'u32[]', space=smem, size = 0x4, offset = 0x4, fixed_abs, tag = 'smem constant byte address 0x4 - core index']
  #allocation1 [shape = 'u32[144,128]{1,0:T(1,128)}', space=vmem, size = 0x12000, scoped, tag = 'internal scratch']
  %s0 = inlined_call_operand.hbm [shape: f32[384,768], index: 0, kind: input, shape index: {}]
  %s1 = inlined_call_operand.hbm [shape: f32[384,768], index: 1, kind: input, shape index: {}]
  %s2 = inlined_call_operand.hbm [shape: s8[384,768], index: 2, kind: input, shape index: {}]
  %s3 = inlined_call_operand.hbm [shape: f32[1,768], index: 3, kind: input, shape index: {}]
  %s4 = inlined_call_operand.hbm [shape: f32[1,768], index: 4, kind: input, shape index: {}]
  %s5 = inlined_call_operand.hbm [shape: f32[384,768], index: 5, kind: output, shape index: {}]
  %s6 = sld [smem:[#allocation0]]
  $region73: #{tpu_custom_call.1} parent=0
    _
  %s8 = ssub.s32 1, %s6
  %s9 = scalar_select 0, %s8, %s6
  $region1: #{tpu_custom_call.1} parent=0
    #allocation2 [shape = 'u8[1179648]{0}', space=vmem, size = 0x120000, scoped, tag = 'input window, operand 0']
    #allocation3 [shape = 's32[2]{0}', space=sflag, size = 0x8, scoped, tag = 'scoped memory for tpu_custom_call.1']
    #allocation4 [shape = 's32[2]{0}', space=sflag, size = 0x8, scoped, tag = 'scoped memory for tpu_custom_call.1']
    #allocation5 [shape = 'u8[1179648]{0}', space=vmem, size = 0x120000, scoped, tag = 'input window, operand 1']
    #allocation6 [shape = 's32[2]{0}', space=sflag, size = 0x8, scoped, tag = 'scoped memory for tpu_custom_call.1']
    #allocation7 [shape = 'u8[294912]{0}', space=vmem, size = 0x48000, scoped, tag = 'input window, operand 2']
    #allocation8 [shape = 'u8[3072]{0}', space=vmem, size = 0xc00, scoped, tag = 'input window, operand 3, single buffered']
    #allocation9 [shape = 's32[1]{0}', space=sflag, size = 0x4, scoped, tag = 'scoped memory for tpu_custom_call.1']
    #allocation10 [shape = 'u8[3072]{0}', space=vmem, size = 0xc00, scoped, tag = 'input window, operand 4, single buffered']
    #allocation11 [shape = 'u8[1179648]{0}', space=vmem, size = 0x120000, scoped, tag = 'output window, operand 0']
    %10 = vsyncpa [#allocation3], 0
    %s11 = scalar_lea.sflag [#allocation3], 1
    %12 = vsyncpa %s11, 0
    %13 = vsyncpa [#allocation6], 0
    %s14 = scalar_lea.sflag [#allocation6], 1
    %15 = vsyncpa %s14, 0
    %16 = vsyncpa [#allocation9], 0
    %17 = vsyncpa [#allocation4], 0
    %s18 = scalar_lea.sflag [#allocation4], 1
    %19 = vsyncpa %s18, 0
    loop: start=0, step=1, limit=4
    $region2: #{tpu_custom_call.1} parent=1 // loop_pre_header
      _
    $region3: #{tpu_custom_call.1} parent=1 // loop_header
      %s21 = sphi 0, %s25
      %p22 = scmp.ge.s32.totalorder %s21, 4
      %s31 = sphi 0, %s33
      %s34 = sphi 0, %s31
      %s35 = sphi 0, %s34
      %s51 = sphi 0, %s35
      %s57 = sphi 0, %s59
      %s60 = sphi 0, %s57
      %s61 = sphi 0, %s60
      %s77 = sphi 0, %s61
      %s83 = sphi 0, %s85
      %s86 = sphi 0, %s83
      %s87 = sphi 0, %s86
      %s103 = sphi 0, %s87
      %s107 = sphi 0, %s107
      %s109 = sphi 0, %s107
      %s110 = sphi 0, %s109
      %s124 = sphi 0, %s110
      %s128 = sphi 0, %s128
      %s130 = sphi 0, %s128
      %s131 = sphi 0, %s130
      %s145 = sphi 0, %s131
      %s151 = sphi 0, %s153
      %s154 = sphi 0, %s151
      %s155 = sphi 0, %s154
      %s171 = sphi 0, %s155
    $region4: #{tpu_custom_call.1} parent=1 // loop_header_branch
      %24 = sbr.rel (%p22) target = $region8
    $region5: #{tpu_custom_call.1} parent=1 // loop_body
      %s26 = ssub.s32 %s21, 1
      %s27 = ssub.s32 %s21, 2
      %s28 = sadd.s32 %s21, 1
      %s29 = ssub.s32 %s21, %s28
      %p30 = scmp.eq.s32.totalorder %s29, 0
      %s32 = sadd.s32 %s31, 1
      %s33 = scalar_select %p30, %s31, %s32
      %p36 = pneg %p30
      %p37 = scmp.eq.s32.totalorder %s21, 1
      %p38 = por %p36, %p37
      %p39 = scmp.ne.s32.totalorder %s31, %s34
      %p40 = scmp.eq.s32.totalorder %s21, 0
      %p41 = por %p39, %p40
      %p42 = scmp.ne.s32.totalorder %s31, %s34
      %p43 = scmp.eq.s32.totalorder %s26, 1
      %p44 = por %p42, %p43
      %p45 = scmp.ne.s32.totalorder %s34, %s35
      %p46 = scmp.eq.s32.totalorder %s26, 0
      %p47 = por %p45, %p46
      %p48 = scmp.ne.s32.totalorder %s34, %s35
      %p49 = scmp.eq.s32.totalorder %s27, 1
      %p50 = por %p48, %p49
      %p52 = scmp.ne.s32.totalorder %s35, %s51
      %p53 = scmp.eq.s32.totalorder %s27, 0
      %p54 = por %p52, %p53
      %s55 = ssub.s32 %s21, %s28
      %p56 = scmp.eq.s32.totalorder %s55, 0
      %s58 = sadd.s32 %s57, 1
      %s59 = scalar_select %p56, %s57, %s58
      %p62 = pneg %p56
      %p63 = scmp.eq.s32.totalorder %s21, 1
      %p64 = por %p62, %p63
      %p65 = scmp.ne.s32.totalorder %s57, %s60
      %p66 = scmp.eq.s32.totalorder %s21, 0
      %p67 = por %p65, %p66
      %p68 = scmp.ne.s32.totalorder %s57, %s60
      %p69 = scmp.eq.s32.totalorder %s26, 1
      %p70 = por %p68, %p69
      %p71 = scmp.ne.s32.totalorder %s60, %s61
      %p72 = scmp.eq.s32.totalorder %s26, 0
      %p73 = por %p71, %p72
      %p74 = scmp.ne.s32.totalorder %s60, %s61
      %p75 = scmp.eq.s32.totalorder %s27, 1
      %p76 = por %p74, %p75
      %p78 = scmp.ne.s32.totalorder %s61, %s77
      %p79 = scmp.eq.s32.totalorder %s27, 0
      %p80 = por %p78, %p79
      %s81 = ssub.s32 %s21, %s28
      %p82 = scmp.eq.s32.totalorder %s81, 0
      %s84 = sadd.s32 %s83, 1
      %s85 = scalar_select %p82, %s83, %s84
      %p88 = pneg %p82
      %p89 = scmp.eq.s32.totalorder %s21, 1
      %p90 = por %p88, %p89
      %p91 = scmp.ne.s32.totalorder %s83, %s86
      %p92 = scmp.eq.s32.totalorder %s21, 0
      %p93 = por %p91, %p92
      %p94 = scmp.ne.s32.totalorder %s83, %s86
      %p95 = scmp.eq.s32.totalorder %s26, 1
      %p96 = por %p94, %p95
      %p97 = scmp.ne.s32.totalorder %s86, %s87
      %p98 = scmp.eq.s32.totalorder %s26, 0
      %p99 = por %p97, %p98
      %p100 = scmp.ne.s32.totalorder %s86, %s87
      %p101 = scmp.eq.s32.totalorder %s27, 1
      %p102 = por %p100, %p101
      %p104 = scmp.ne.s32.totalorder %s87, %s103
      %p105 = scmp.eq.s32.totalorder %s27, 0
      %p106 = por %p104, %p105
      %s108 = sadd.s32 %s107, 1
      %p111 = scmp.eq.s32.totalorder %s21, 1
      %p112 = scmp.ne.s32.totalorder %s107, %s109
      %p113 = scmp.eq.s32.totalorder %s21, 0
      %p114 = por %p112, %p113
      %p115 = scmp.ne.s32.totalorder %s107, %s109
      %p116 = scmp.eq.s32.totalorder %s26, 1
      %p117 = por %p115, %p116
      %p118 = scmp.ne.s32.totalorder %s109, %s110
      %p119 = scmp.eq.s32.totalorder %s26, 0
      %p120 = por %p118, %p119
      %p121 = scmp.ne.s32.totalorder %s109, %s110
      %p122 = scmp.eq.s32.totalorder %s27, 1
      %p123 = por %p121, %p122
      %p125 = scmp.ne.s32.totalorder %s110, %s124
      %p126 = scmp.eq.s32.totalorder %s27, 0
      %p127 = por %p125, %p126
      %s129 = sadd.s32 %s128, 1
      %p132 = scmp.eq.s32.totalorder %s21, 1
      %p133 = scmp.ne.s32.totalorder %s128, %s130
      %p134 = scmp.eq.s32.totalorder %s21, 0
      %p135 = por %p133, %p134
      %p136 = scmp.ne.s32.totalorder %s128, %s130
      %p137 = scmp.eq.s32.totalorder %s26, 1
      %p138 = por %p136, %p137
      %p139 = scmp.ne.s32.totalorder %s130, %s131
      %p140 = scmp.eq.s32.totalorder %s26, 0
      %p141 = por %p139, %p140
      %p142 = scmp.ne.s32.totalorder %s130, %s131
      %p143 = scmp.eq.s32.totalorder %s27, 1
      %p144 = por %p142, %p143
      %p146 = scmp.ne.s32.totalorder %s131, %s145
      %p147 = scmp.eq.s32.totalorder %s27, 0
      %p148 = por %p146, %p147
      %s149 = ssub.s32 %s21, %s28
      %p150 = scmp.eq.s32.totalorder %s149, 0
      %s152 = sadd.s32 %s151, 1
      %s153 = scalar_select %p150, %s151, %s152
      %p156 = pneg %p150
      %p157 = scmp.eq.s32.totalorder %s21, 1
      %p158 = por %p156, %p157
      %p159 = scmp.ne.s32.totalorder %s151, %s154
      %p160 = scmp.eq.s32.totalorder %s21, 0
      %p161 = por %p159, %p160
      %p162 = scmp.ne.s32.totalorder %s151, %s154
      %p163 = scmp.eq.s32.totalorder %s26, 1
      %p164 = por %p162, %p163
      %p165 = scmp.ne.s32.totalorder %s154, %s155
      %p166 = scmp.eq.s32.totalorder %s26, 0
      %p167 = por %p165, %p166
      %p168 = scmp.ne.s32.totalorder %s154, %s155
      %p169 = scmp.eq.s32.totalorder %s27, 1
      %p170 = por %p168, %p169
      %p172 = scmp.ne.s32.totalorder %s155, %s171
      %p173 = scmp.eq.s32.totalorder %s27, 0
      %p174 = por %p172, %p173
      %p175 = scmp.le.s32.totalorder 1, %s21
      %p176 = scmp.lt.s32.totalorder %s21, 3
      %p177 = pnand %p175, %p176
      %p178 = pneg %p177
      // Predicated region
      $region9: #{tpu_custom_call.1} parent=5 // pred_check
        _
      $region10: #{tpu_custom_call.1} parent=5 // pred_check_branch
        %180 = sbr.rel (%p177) target = $region12
      $region11: #{tpu_custom_call.1} parent=5 // pred_region
        %s181 = ssub.s32 %s21, 1
        // Predicated region
        $region13: #{tpu_custom_call.1} parent=11 // pred_check
          %p182 = pneg %p120
        $region14: #{tpu_custom_call.1} parent=11 // pred_check_branch
          %184 = sbr.rel (%p182) target = $region16
        $region15: #{tpu_custom_call.1} parent=11 // pred_region
          %s186 = ssub.s32 96, 96
          %187 = vsyncadd [#allocation9], %s186
          %s189 = sshll.u32 [#allocation8], 4
          %s190 = int_to_ptr.vmem [resolvable:$true] %s189
          %192 = dma.hbm_to_vmem [thread:$0]  %s3, 96, %s190, [#allocation9]
        $region16: #{tpu_custom_call.1} parent=11 // pred_fallthru
          _
        // Predicated region
        $region17: #{tpu_custom_call.1} parent=11 // pred_check
          %p193 = pneg %p141
        $region18: #{tpu_custom_call.1} parent=11 // pred_check_branch
          %195 = sbr.rel (%p193) target = $region20
        $region19: #{tpu_custom_call.1} parent=11 // pred_region
          %s197 = ssub.s32 96, 96
          %198 = vsyncadd [#allocation9], %s197
          %s200 = sshll.u32 [#allocation10], 4
          %s201 = int_to_ptr.vmem [resolvable:$true] %s200
          %203 = dma.hbm_to_vmem [thread:$0]  %s4, 96, %s201, [#allocation9]
        $region20: #{tpu_custom_call.1} parent=11 // pred_fallthru
          _
      $region12: #{tpu_custom_call.1} parent=5 // pred_fallthru
        _
      %p204 = scmp.lt.s32.totalorder %s21, 2
      // Predicated region
      $region21: #{tpu_custom_call.1} parent=5 // pred_check
        %p205 = pneg %p204
      $region22: #{tpu_custom_call.1} parent=5 // pred_check_branch
        %207 = sbr.rel (%p205) target = $region24
      $region23: #{tpu_custom_call.1} parent=5 // pred_region
        // Predicated region
        $region25: #{tpu_custom_call.1} parent=23 // pred_check
          %p208 = pneg %p41
        $region26: #{tpu_custom_call.1} parent=23 // pred_check_branch
          %210 = sbr.rel (%p208) target = $region28
        $region27: #{tpu_custom_call.1} parent=23 // pred_region
          %s211 = sand.u32 %s31, 1
          %s212 = scalar_lea.sflag [#allocation3], %s211
          %s213 = sand.u32 %s31, 1
          %s214 = smul.addr %s213, 1152
          %s215 = scalar_lea.vmem [#allocation2], %s214
          %s216 = smul.u32 24, %s21
          %s218 = ssub.s32 18432, 18432
          %219 = vsyncadd %s212, %s218
          %s220 = smul.addr %s216, 6
          %s221 = smul.addr %s220, 128
          %s222 = scalar_lea.hbm %s0, %s221
          %s223 = sshll.u32 %s215, 4
          %s224 = int_to_ptr.vmem [resolvable:$true] %s223
          %229 = dma.hbm_to_vmem [thread:$0]  %s222, 18432, %s224, %s212, 768, 768, 48
        $region28: #{tpu_custom_call.1} parent=23 // pred_fallthru
          _
        // Predicated region
        $region29: #{tpu_custom_call.1} parent=23 // pred_check
          %p230 = pneg %p67
        $region30: #{tpu_custom_call.1} parent=23 // pred_check_branch
          %232 = sbr.rel (%p230) target = $region32
        $region31: #{tpu_custom_call.1} parent=23 // pred_region
          %s233 = sand.u32 %s21, 1
          %s234 = scalar_lea.sflag [#allocation6], %s233
          %s235 = sand.u32 %s57, 1
          %s236 = smul.addr %s235, 1152
          %s237 = scalar_lea.vmem [#allocation5], %s236
          %s238 = smul.u32 24, %s21
          %s240 = ssub.s32 18432, 18432
          %241 = vsyncadd %s234, %s240
          %s242 = smul.addr %s238, 6
          %s243 = smul.addr %s242, 128
          %s244 = scalar_lea.hbm %s1, %s243
          %s245 = sshll.u32 %s237, 4
          %s246 = int_to_ptr.vmem [resolvable:$true] %s245
          %251 = dma.hbm_to_vmem [thread:$0]  %s244, 18432, %s246, %s234, 768, 768, 48
        $region32: #{tpu_custom_call.1} parent=23 // pred_fallthru
          _
        // Predicated region
        $region33: #{tpu_custom_call.1} parent=23 // pred_check
          %p252 = pneg %p93
        $region34: #{tpu_custom_call.1} parent=23 // pred_check_branch
          %254 = sbr.rel (%p252) target = $region36
        $region35: #{tpu_custom_call.1} parent=23 // pred_region
          %s255 = sand.u32 %s21, 1
          %s256 = scalar_lea.sflag [#allocation6], %s255
          %s257 = sand.u32 %s83, 1
          %s258 = smul.addr %s257, 288
          %s259 = scalar_lea.vmem [#allocation7], %s258
          %s260 = smul.u32 6, %s21
          %s262 = ssub.s32 4608, 4608
          %263 = vsyncadd %s256, %s262
          %s264 = smul.addr %s260, 6
          %s265 = smul.addr %s264, 128
          %s266 = scalar_lea.hbm %s2, %s265
          %s267 = sshll.u32 %s259, 4
          %s268 = int_to_ptr.vmem [resolvable:$true] %s267
          %273 = dma.hbm_to_vmem [thread:$0]  %s266, 4608, %s268, %s256, 768, 768, 48
        $region36: #{tpu_custom_call.1} parent=23 // pred_fallthru
          _
      $region24: #{tpu_custom_call.1} parent=5 // pred_fallthru
        _
      %p274 = scmp.le.s32.totalorder 1, %s21
      %p275 = scmp.lt.s32.totalorder %s21, 3
      %p276 = pnand %p274, %p275
      %p277 = pneg %p276
      // Predicated region
      $region37: #{tpu_custom_call.1} parent=5 // pred_check
        _
      $region38: #{tpu_custom_call.1} parent=5 // pred_check_branch
        %279 = sbr.rel (%p276) target = $region40
      $region39: #{tpu_custom_call.1} parent=5 // pred_region
        %s280 = ssub.s32 %s21, 1
        %s281 = sand.u32 %s34, 1
        %s282 = scalar_lea.sflag [#allocation3], %s281
        %s283 = sand.u32 %s34, 1
        %s284 = smul.addr %s283, 1152
        %s285 = scalar_lea.vmem [#allocation2], %s284
        // Predicated region
        $region41: #{tpu_custom_call.1} parent=39 // pred_check
          %p286 = pneg %p47
        $region42: #{tpu_custom_call.1} parent=39 // pred_check_branch
          %288 = sbr.rel (%p286) target = $region44
        $region43: #{tpu_custom_call.1} parent=39 // pred_region
          %289 = dma.done %s282, 18432
        $region44: #{tpu_custom_call.1} parent=39 // pred_fallthru
          _
        %s290 = sand.u32 %s26, 1
        %s291 = scalar_lea.sflag [#allocation6], %s290
        %s292 = sand.u32 %s60, 1
        %s293 = smul.addr %s292, 1152
        %s294 = scalar_lea.vmem [#allocation5], %s293
        // Predicated region
        $region45: #{tpu_custom_call.1} parent=39 // pred_check
          %p295 = pneg %p73
        $region46: #{tpu_custom_call.1} parent=39 // pred_check_branch
          %297 = sbr.rel (%p295) target = $region48
        $region47: #{tpu_custom_call.1} parent=39 // pred_region
          %298 = dma.done %s291, 18432
        $region48: #{tpu_custom_call.1} parent=39 // pred_fallthru
          _
        %s299 = sand.u32 %s26, 1
        %s300 = scalar_lea.sflag [#allocation6], %s299
        %s301 = sand.u32 %s86, 1
        %s302 = smul.addr %s301, 288
        %s303 = scalar_lea.vmem [#allocation7], %s302
        // Predicated region
        $region49: #{tpu_custom_call.1} parent=39 // pred_check
          %p304 = pneg %p99
        $region50: #{tpu_custom_call.1} parent=39 // pred_check_branch
          %306 = sbr.rel (%p304) target = $region52
        $region51: #{tpu_custom_call.1} parent=39 // pred_region
          %307 = dma.done %s300, 4608
        $region52: #{tpu_custom_call.1} parent=39 // pred_fallthru
          _
        // Predicated region
        $region53: #{tpu_custom_call.1} parent=39 // pred_check
          %p308 = pneg %p120
        $region54: #{tpu_custom_call.1} parent=39 // pred_check_branch
          %310 = sbr.rel (%p308) target = $region56
        $region55: #{tpu_custom_call.1} parent=39 // pred_region
          %311 = dma.done [#allocation9], 96
        $region56: #{tpu_custom_call.1} parent=39 // pred_fallthru
          _
        // Predicated region
        $region57: #{tpu_custom_call.1} parent=39 // pred_check
          %p312 = pneg %p141
        $region58: #{tpu_custom_call.1} parent=39 // pred_check_branch
          %314 = sbr.rel (%p312) target = $region60
        $region59: #{tpu_custom_call.1} parent=39 // pred_region
          %315 = dma.done [#allocation9], 96
        $region60: #{tpu_custom_call.1} parent=39 // pred_fallthru
          _
        %s316 = sand.u32 %s34, 1
        %s317 = scalar_lea.sflag [#allocation3], %s316
        %s318 = sand.u32 %s34, 1
        %s319 = smul.addr %s318, 1152
        %s320 = scalar_lea.vmem [#allocation2], %s319
        %p321 = pneg %p47
        %p322 = pneg %p44
        %s323 = sand.u32 %s26, 1
        %s324 = scalar_lea.sflag [#allocation6], %s323
        %s325 = sand.u32 %s60, 1
        %s326 = smul.addr %s325, 1152
        %s327 = scalar_lea.vmem [#allocation5], %s326
        %p328 = pneg %p73
        %p329 = pneg %p70
        %s330 = sand.u32 %s26, 1
        %s331 = scalar_lea.sflag [#allocation6], %s330
        %s332 = sand.u32 %s86, 1
        %s333 = smul.addr %s332, 288
        %s334 = scalar_lea.vmem [#allocation7], %s333
        %p335 = pneg %p99
        %p336 = pneg %p96
        %p337 = pneg %p120
        %p338 = pneg %p117
        %p339 = pneg %p141
        %p340 = pneg %p138
        %p341 = pneg %p167
        %p342 = pneg %p164
        %s343 = sand.u32 %s154, 1
        %s344 = scalar_lea.sflag [#allocation4], %s343
        %s345 = sand.u32 %s154, 1
        %s346 = smul.addr %s345, 1152
        %s347 = scalar_lea.vmem [#allocation11], %s346
        %s348 = smul.u32 24, %s26
        %s349 = smul.u32 24, %s26
        %s350 = smul.u32 6, %s26
        %s351 = smul.u32 24, %s26
        %v352 = vld [vmem:[%s303] sm:$0xff]
        %v353 = vld [vmem:[%s303 + $0x8] sm:$0xff]
        %v354 = vld [vmem:[%s303 + $0x10] sm:$0xff]
        %v355 = vld [vmem:[%s303 + $0x18] sm:$0xff]
        %v356 = vld [vmem:[%s303 + $0x20] sm:$0xff]
        %v357 = vld [vmem:[%s303 + $0x28] sm:$0xff]
        %v358 = vld [vmem:[%s303 + $0x30] sm:$0xff]
        %v359 = vld [vmem:[%s303 + $0x38] sm:$0xff]
        %v360 = vld [vmem:[%s303 + $0x40] sm:$0xff]
        %v361 = vld [vmem:[%s303 + $0x48] sm:$0xff]
        %v362 = vld [vmem:[%s303 + $0x50] sm:$0xff]
        %v363 = vld [vmem:[%s303 + $0x58] sm:$0xff]
        %v364 = vld [vmem:[%s303 + $0x60] sm:$0xff]
        %v365 = vld [vmem:[%s303 + $0x68] sm:$0xff]
        %v366 = vld [vmem:[%s303 + $0x70] sm:$0xff]
        %v367 = vld [vmem:[%s303 + $0x78] sm:$0xff]
        %v368 = vld [vmem:[%s303 + $0x80] sm:$0xff]
        %v369 = vld [vmem:[%s303 + $0x88] sm:$0xff]
        %v370 = vld [vmem:[%s303 + $0x90] sm:$0xff]
        %v371 = vld [vmem:[%s303 + $0x98] sm:$0xff]
        %v372 = vld [vmem:[%s303 + $0xa0] sm:$0xff]
        %v373 = vld [vmem:[%s303 + $0xa8] sm:$0xff]
        %v374 = vld [vmem:[%s303 + $0xb0] sm:$0xff]
        %v375 = vld [vmem:[%s303 + $0xb8] sm:$0xff]
        %v376 = vld [vmem:[%s303 + $0xc0] sm:$0xff]
        %v377 = vld [vmem:[%s303 + $0xc8] sm:$0xff]
        %v378 = vld [vmem:[%s303 + $0xd0] sm:$0xff]
        %v379 = vld [vmem:[%s303 + $0xd8] sm:$0xff]
        %v380 = vld [vmem:[%s303 + $0xe0] sm:$0xff]
        %v381 = vld [vmem:[%s303 + $0xe8] sm:$0xff]
        %v382 = vld [vmem:[%s303 + $0xf0] sm:$0xff]
        %v383 = vld [vmem:[%s303 + $0xf8] sm:$0xff]
        %v384 = vld [vmem:[%s303 + $0x100] sm:$0xff]
        %v385 = vld [vmem:[%s303 + $0x108] sm:$0xff]
        %v386 = vld [vmem:[%s303 + $0x110] sm:$0xff]
        %v387 = vld [vmem:[%s303 + $0x118] sm:$0xff]
        %v388 = vunpack.c.0.s8 %v352
        %v389 = vunpack.c.0.s8 %v353
        %v390 = vunpack.c.0.s8 %v354
        %v391 = vunpack.c.0.s8 %v355
        %v392 = vunpack.c.0.s8 %v356
        %v393 = vunpack.c.0.s8 %v357
        %v394 = vunpack.c.1.s8 %v352
        %v395 = vunpack.c.1.s8 %v353
        %v396 = vunpack.c.1.s8 %v354
        %v397 = vunpack.c.1.s8 %v355
        %v398 = vunpack.c.1.s8 %v356
        %v399 = vunpack.c.1.s8 %v357
        %v400 = vunpack.c.2.s8 %v352
        %v401 = vunpack.c.2.s8 %v353
        %v402 = vunpack.c.2.s8 %v354
        %v403 = vunpack.c.2.s8 %v355
        %v404 = vunpack.c.2.s8 %v356
        %v405 = vunpack.c.2.s8 %v357
        %v406 = vunpack.c.3.s8 %v352
        %v407 = vunpack.c.3.s8 %v353
        %v408 = vunpack.c.3.s8 %v354
        %v409 = vunpack.c.3.s8 %v355
        %v410 = vunpack.c.3.s8 %v356
        %v411 = vunpack.c.3.s8 %v357
        %v412 = vunpack.c.0.s8 %v358
        %v413 = vunpack.c.0.s8 %v359
        %v414 = vunpack.c.0.s8 %v360
        %v415 = vunpack.c.0.s8 %v361
        %v416 = vunpack.c.0.s8 %v362
        %v417 = vunpack.c.0.s8 %v363
        %v418 = vunpack.c.1.s8 %v358
        %v419 = vunpack.c.1.s8 %v359
        %v420 = vunpack.c.1.s8 %v360
        %v421 = vunpack.c.1.s8 %v361
        %v422 = vunpack.c.1.s8 %v362
        %v423 = vunpack.c.1.s8 %v363
        %v424 = vunpack.c.2.s8 %v358
        %v425 = vunpack.c.2.s8 %v359
        %v426 = vunpack.c.2.s8 %v360
        %v427 = vunpack.c.2.s8 %v361
        %v428 = vunpack.c.2.s8 %v362
        %v429 = vunpack.c.2.s8 %v363
        %v430 = vunpack.c.3.s8 %v358
        %v431 = vunpack.c.3.s8 %v359
        %v432 = vunpack.c.3.s8 %v360
        %v433 = vunpack.c.3.s8 %v361
        %v434 = vunpack.c.3.s8 %v362
        %v435 = vunpack.c.3.s8 %v363
        %v436 = vunpack.c.0.s8 %v364
        %v437 = vunpack.c.0.s8 %v365
        %v438 = vunpack.c.0.s8 %v366
        %v439 = vunpack.c.0.s8 %v367
        %v440 = vunpack.c.0.s8 %v368
        %v441 = vunpack.c.0.s8 %v369
        %v442 = vunpack.c.1.s8 %v364
        %v443 = vunpack.c.1.s8 %v365
        %v444 = vunpack.c.1.s8 %v366
        %v445 = vunpack.c.1.s8 %v367
        %v446 = vunpack.c.1.s8 %v368
        %v447 = vunpack.c.1.s8 %v369
        %v448 = vunpack.c.2.s8 %v364
        %v449 = vunpack.c.2.s8 %v365
        %v450 = vunpack.c.2.s8 %v366
        %v451 = vunpack.c.2.s8 %v367
        %v452 = vunpack.c.2.s8 %v368
        %v453 = vunpack.c.2.s8 %v369
        %v454 = vunpack.c.3.s8 %v364
        %v455 = vunpack.c.3.s8 %v365
        %v456 = vunpack.c.3.s8 %v366
        %v457 = vunpack.c.3.s8 %v367
        %v458 = vunpack.c.3.s8 %v368
        %v459 = vunpack.c.3.s8 %v369
        %v460 = vunpack.c.0.s8 %v370
        %v461 = vunpack.c.0.s8 %v371
        %v462 = vunpack.c.0.s8 %v372
        %v463 = vunpack.c.0.s8 %v373
        %v464 = vunpack.c.0.s8 %v374
        %v465 = vunpack.c.0.s8 %v375
        %v466 = vunpack.c.1.s8 %v370
        %v467 = vunpack.c.1.s8 %v371
        %v468 = vunpack.c.1.s8 %v372
        %v469 = vunpack.c.1.s8 %v373
        %v470 = vunpack.c.1.s8 %v374
        %v471 = vunpack.c.1.s8 %v375
        %v472 = vunpack.c.2.s8 %v370
        %v473 = vunpack.c.2.s8 %v371
        %v474 = vunpack.c.2.s8 %v372
        %v475 = vunpack.c.2.s8 %v373
        %v476 = vunpack.c.2.s8 %v374
        %v477 = vunpack.c.2.s8 %v375
        %v478 = vunpack.c.3.s8 %v370
        %v479 = vunpack.c.3.s8 %v371
        %v480 = vunpack.c.3.s8 %v372
        %v481 = vunpack.c.3.s8 %v373
        %v482 = vunpack.c.3.s8 %v374
        %v483 = vunpack.c.3.s8 %v375
        %v484 = vunpack.c.0.s8 %v376
        %v485 = vunpack.c.0.s8 %v377
        %v486 = vunpack.c.0.s8 %v378
        %v487 = vunpack.c.0.s8 %v379
        %v488 = vunpack.c.0.s8 %v380
        %v489 = vunpack.c.0.s8 %v381
        %v490 = vunpack.c.1.s8 %v376
        %v491 = vunpack.c.1.s8 %v377
        %v492 = vunpack.c.1.s8 %v378
        %v493 = vunpack.c.1.s8 %v379
        %v494 = vunpack.c.1.s8 %v380
        %v495 = vunpack.c.1.s8 %v381
        %v496 = vunpack.c.2.s8 %v376
        %v497 = vunpack.c.2.s8 %v377
        %v498 = vunpack.c.2.s8 %v378
        %v499 = vunpack.c.2.s8 %v379
        %v500 = vunpack.c.2.s8 %v380
        %v501 = vunpack.c.2.s8 %v381
        %v502 = vunpack.c.3.s8 %v376
        %v503 = vunpack.c.3.s8 %v377
        %v504 = vunpack.c.3.s8 %v378
        %v505 = vunpack.c.3.s8 %v379
        %v506 = vunpack.c.3.s8 %v380
        %v507 = vunpack.c.3.s8 %v381
        %v508 = vunpack.c.0.s8 %v382
        %v509 = vunpack.c.0.s8 %v383
        %v510 = vunpack.c.0.s8 %v384
        %v511 = vunpack.c.0.s8 %v385
        %v512 = vunpack.c.0.s8 %v386
        %v513 = vunpack.c.0.s8 %v387
        %v514 = vunpack.c.1.s8 %v382
        %v515 = vunpack.c.1.s8 %v383
        %v516 = vunpack.c.1.s8 %v384
        %v517 = vunpack.c.1.s8 %v385
        %v518 = vunpack.c.1.s8 %v386
        %v519 = vunpack.c.1.s8 %v387
        %v520 = vunpack.c.2.s8 %v382
        %v521 = vunpack.c.2.s8 %v383
        %v522 = vunpack.c.2.s8 %v384
        %v523 = vunpack.c.2.s8 %v385
        %v524 = vunpack.c.2.s8 %v386
        %v525 = vunpack.c.2.s8 %v387
        %v526 = vunpack.c.3.s8 %v382
        %v527 = vunpack.c.3.s8 %v383
        %v528 = vunpack.c.3.s8 %v384
        %v529 = vunpack.c.3.s8 %v385
        %v530 = vunpack.c.3.s8 %v386
        %v531 = vunpack.c.3.s8 %v387
        %v532 = vcvt.s32.f32 %v388
        %v533 = vcvt.s32.f32 %v389
        %v534 = vcvt.s32.f32 %v390
        %v535 = vcvt.s32.f32 %v391
        %v536 = vcvt.s32.f32 %v392
        %v537 = vcvt.s32.f32 %v393
        %v538 = vcvt.s32.f32 %v394
        %v539 = vcvt.s32.f32 %v395
        %v540 = vcvt.s32.f32 %v396
        %v541 = vcvt.s32.f32 %v397
        %v542 = vcvt.s32.f32 %v398
        %v543 = vcvt.s32.f32 %v399
        %v544 = vcvt.s32.f32 %v400
        %v545 = vcvt.s32.f32 %v401
        %v546 = vcvt.s32.f32 %v402
        %v547 = vcvt.s32.f32 %v403
        %v548 = vcvt.s32.f32 %v404
        %v549 = vcvt.s32.f32 %v405
        %v550 = vcvt.s32.f32 %v406
        %v551 = vcvt.s32.f32 %v407
        %v552 = vcvt.s32.f32 %v408
        %v553 = vcvt.s32.f32 %v409
        %v554 = vcvt.s32.f32 %v410
        %v555 = vcvt.s32.f32 %v411
        %v556 = vcvt.s32.f32 %v412
        %v557 = vcvt.s32.f32 %v413
        %v558 = vcvt.s32.f32 %v414
        %v559 = vcvt.s32.f32 %v415
        %v560 = vcvt.s32.f32 %v416
        %v561 = vcvt.s32.f32 %v417
        %v562 = vcvt.s32.f32 %v418
        %v563 = vcvt.s32.f32 %v419
        %v564 = vcvt.s32.f32 %v420
        %v565 = vcvt.s32.f32 %v421
        %v566 = vcvt.s32.f32 %v422
        %v567 = vcvt.s32.f32 %v423
        %v568 = vcvt.s32.f32 %v424
        %v569 = vcvt.s32.f32 %v425
        %v570 = vcvt.s32.f32 %v426
        %v571 = vcvt.s32.f32 %v427
        %v572 = vcvt.s32.f32 %v428
        %v573 = vcvt.s32.f32 %v429
        %v574 = vcvt.s32.f32 %v430
        %v575 = vcvt.s32.f32 %v431
        %v576 = vcvt.s32.f32 %v432
        %v577 = vcvt.s32.f32 %v433
        %v578 = vcvt.s32.f32 %v434
        %v579 = vcvt.s32.f32 %v435
        %v580 = vcvt.s32.f32 %v436
        %v581 = vcvt.s32.f32 %v437
        %v582 = vcvt.s32.f32 %v438
        %v583 = vcvt.s32.f32 %v439
        %v584 = vcvt.s32.f32 %v440
        %v585 = vcvt.s32.f32 %v441
        %v586 = vcvt.s32.f32 %v442
        %v587 = vcvt.s32.f32 %v443
        %v588 = vcvt.s32.f32 %v444
        %v589 = vcvt.s32.f32 %v445
        %v590 = vcvt.s32.f32 %v446
        %v591 = vcvt.s32.f32 %v447
        %v592 = vcvt.s32.f32 %v448
        %v593 = vcvt.s32.f32 %v449
        %v594 = vcvt.s32.f32 %v450
        %v595 = vcvt.s32.f32 %v451
        %v596 = vcvt.s32.f32 %v452
        %v597 = vcvt.s32.f32 %v453
        %v598 = vcvt.s32.f32 %v454
        %v599 = vcvt.s32.f32 %v455
        %v600 = vcvt.s32.f32 %v456
        %v601 = vcvt.s32.f32 %v457
        %v602 = vcvt.s32.f32 %v458
        %v603 = vcvt.s32.f32 %v459
        %v604 = vcvt.s32.f32 %v460
        %v605 = vcvt.s32.f32 %v461
        %v606 = vcvt.s32.f32 %v462
        %v607 = vcvt.s32.f32 %v463
        %v608 = vcvt.s32.f32 %v464
        %v609 = vcvt.s32.f32 %v465
        %v610 = vcvt.s32.f32 %v466
        %v611 = vcvt.s32.f32 %v467
        %v612 = vcvt.s32.f32 %v468
        %v613 = vcvt.s32.f32 %v469
        %v614 = vcvt.s32.f32 %v470
        %v615 = vcvt.s32.f32 %v471
        %v616 = vcvt.s32.f32 %v472
        %v617 = vcvt.s32.f32 %v473
        %v618 = vcvt.s32.f32 %v474
        %v619 = vcvt.s32.f32 %v475
        %v620 = vcvt.s32.f32 %v476
        %v621 = vcvt.s32.f32 %v477
        %v622 = vcvt.s32.f32 %v478
        %v623 = vcvt.s32.f32 %v479
        %v624 = vcvt.s32.f32 %v480
        %v625 = vcvt.s32.f32 %v481
        %v626 = vcvt.s32.f32 %v482
        %v627 = vcvt.s32.f32 %v483
        %v628 = vcvt.s32.f32 %v484
        %v629 = vcvt.s32.f32 %v485
        %v630 = vcvt.s32.f32 %v486
        %v631 = vcvt.s32.f32 %v487
        %v632 = vcvt.s32.f32 %v488
        %v633 = vcvt.s32.f32 %v489
        %v634 = vcvt.s32.f32 %v490
        %v635 = vcvt.s32.f32 %v491
        %v636 = vcvt.s32.f32 %v492
        %v637 = vcvt.s32.f32 %v493
        %v638 = vcvt.s32.f32 %v494
        %v639 = vcvt.s32.f32 %v495
        %v640 = vcvt.s32.f32 %v496
        %v641 = vcvt.s32.f32 %v497
        %v642 = vcvt.s32.f32 %v498
        %v643 = vcvt.s32.f32 %v499
        %v644 = vcvt.s32.f32 %v500
        %v645 = vcvt.s32.f32 %v501
        %v646 = vcvt.s32.f32 %v502
        %v647 = vcvt.s32.f32 %v503
        %v648 = vcvt.s32.f32 %v504
        %v649 = vcvt.s32.f32 %v505
        %v650 = vcvt.s32.f32 %v506
        %v651 = vcvt.s32.f32 %v507
        %v652 = vcvt.s32.f32 %v508
        %v653 = vcvt.s32.f32 %v509
        %v654 = vcvt.s32.f32 %v510
        %v655 = vcvt.s32.f32 %v511
        %v656 = vcvt.s32.f32 %v512
        %v657 = vcvt.s32.f32 %v513
        %v658 = vcvt.s32.f32 %v514
        %v659 = vcvt.s32.f32 %v515
        %v660 = vcvt.s32.f32 %v516
        %v661 = vcvt.s32.f32 %v517
        %v662 = vcvt.s32.f32 %v518
        %v663 = vcvt.s32.f32 %v519
        %v664 = vcvt.s32.f32 %v520
        %v665 = vcvt.s32.f32 %v521
        %v666 = vcvt.s32.f32 %v522
        %v667 = vcvt.s32.f32 %v523
        %v668 = vcvt.s32.f32 %v524
        %v669 = vcvt.s32.f32 %v525
        %v670 = vcvt.s32.f32 %v526
        %v671 = vcvt.s32.f32 %v527
        %v672 = vcvt.s32.f32 %v528
        %v673 = vcvt.s32.f32 %v529
        %v674 = vcvt.s32.f32 %v530
        %v675 = vcvt.s32.f32 %v531
        %v676 = vld [vmem:[%s285] sm:$0xff]
        %v677 = vld [vmem:[%s285 + $0x8] sm:$0xff]
        %v678 = vld [vmem:[%s285 + $0x10] sm:$0xff]
        %v679 = vld [vmem:[%s285 + $0x18] sm:$0xff]
        %v680 = vld [vmem:[%s285 + $0x20] sm:$0xff]
        %v681 = vld [vmem:[%s285 + $0x28] sm:$0xff]
        %v682 = vld [vmem:[%s285 + $0x30] sm:$0xff]
        %v683 = vld [vmem:[%s285 + $0x38] sm:$0xff]
        %v684 = vld [vmem:[%s285 + $0x40] sm:$0xff]
        %v685 = vld [vmem:[%s285 + $0x48] sm:$0xff]
        %v686 = vld [vmem:[%s285 + $0x50] sm:$0xff]
        %v687 = vld [vmem:[%s285 + $0x58] sm:$0xff]
        %v688 = vld [vmem:[%s285 + $0x60] sm:$0xff]
        %v689 = vld [vmem:[%s285 + $0x68] sm:$0xff]
        %v690 = vld [vmem:[%s285 + $0x70] sm:$0xff]
        %v691 = vld [vmem:[%s285 + $0x78] sm:$0xff]
        %v692 = vld [vmem:[%s285 + $0x80] sm:$0xff]
        %v693 = vld [vmem:[%s285 + $0x88] sm:$0xff]
        %v694 = vld [vmem:[%s285 + $0x90] sm:$0xff]
        %v695 = vld [vmem:[%s285 + $0x98] sm:$0xff]
        %v696 = vld [vmem:[%s285 + $0xa0] sm:$0xff]
        %v697 = vld [vmem:[%s285 + $0xa8] sm:$0xff]
        %v698 = vld [vmem:[%s285 + $0xb0] sm:$0xff]
        %v699 = vld [vmem:[%s285 + $0xb8] sm:$0xff]
        %v700 = vld [vmem:[%s285 + $0xc0] sm:$0xff]
        %v701 = vld [vmem:[%s285 + $0xc8] sm:$0xff]
        %v702 = vld [vmem:[%s285 + $0xd0] sm:$0xff]
        %v703 = vld [vmem:[%s285 + $0xd8] sm:$0xff]
        %v704 = vld [vmem:[%s285 + $0xe0] sm:$0xff]
        %v705 = vld [vmem:[%s285 + $0xe8] sm:$0xff]
        %v706 = vld [vmem:[%s285 + $0xf0] sm:$0xff]
        %v707 = vld [vmem:[%s285 + $0xf8] sm:$0xff]
        %v708 = vld [vmem:[%s285 + $0x100] sm:$0xff]
        %v709 = vld [vmem:[%s285 + $0x108] sm:$0xff]
        %v710 = vld [vmem:[%s285 + $0x110] sm:$0xff]
        %v711 = vld [vmem:[%s285 + $0x118] sm:$0xff]
        %v712 = vld [vmem:[%s285 + $0x120] sm:$0xff]
        %v713 = vld [vmem:[%s285 + $0x128] sm:$0xff]
        %v714 = vld [vmem:[%s285 + $0x130] sm:$0xff]
        %v715 = vld [vmem:[%s285 + $0x138] sm:$0xff]
        %v716 = vld [vmem:[%s285 + $0x140] sm:$0xff]
        %v717 = vld [vmem:[%s285 + $0x148] sm:$0xff]
        %v718 = vld [vmem:[%s285 + $0x150] sm:$0xff]
        %v719 = vld [vmem:[%s285 + $0x158] sm:$0xff]
        %v720 = vld [vmem:[%s285 + $0x160] sm:$0xff]
        %v721 = vld [vmem:[%s285 + $0x168] sm:$0xff]
        %v722 = vld [vmem:[%s285 + $0x170] sm:$0xff]
        %v723 = vld [vmem:[%s285 + $0x178] sm:$0xff]
        %v724 = vld [vmem:[%s285 + $0x180] sm:$0xff]
        %v725 = vld [vmem:[%s285 + $0x188] sm:$0xff]
        %v726 = vld [vmem:[%s285 + $0x190] sm:$0xff]
        %v727 = vld [vmem:[%s285 + $0x198] sm:$0xff]
        %v728 = vld [vmem:[%s285 + $0x1a0] sm:$0xff]
        %v729 = vld [vmem:[%s285 + $0x1a8] sm:$0xff]
        %v730 = vld [vmem:[%s285 + $0x1b0] sm:$0xff]
        %v731 = vld [vmem:[%s285 + $0x1b8] sm:$0xff]
        %v732 = vld [vmem:[%s285 + $0x1c0] sm:$0xff]
        %v733 = vld [vmem:[%s285 + $0x1c8] sm:$0xff]
        %v734 = vld [vmem:[%s285 + $0x1d0] sm:$0xff]
        %v735 = vld [vmem:[%s285 + $0x1d8] sm:$0xff]
        %v736 = vld [vmem:[%s285 + $0x1e0] sm:$0xff]
        %v737 = vld [vmem:[%s285 + $0x1e8] sm:$0xff]
        %v738 = vld [vmem:[%s285 + $0x1f0] sm:$0xff]
        %v739 = vld [vmem:[%s285 + $0x1f8] sm:$0xff]
        %v740 = vld [vmem:[%s285 + $0x200] sm:$0xff]
        %v741 = vld [vmem:[%s285 + $0x208] sm:$0xff]
        %v742 = vld [vmem:[%s285 + $0x210] sm:$0xff]
        %v743 = vld [vmem:[%s285 + $0x218] sm:$0xff]
        %v744 = vld [vmem:[%s285 + $0x220] sm:$0xff]
        %v745 = vld [vmem:[%s285 + $0x228] sm:$0xff]
        %v746 = vld [vmem:[%s285 + $0x230] sm:$0xff]
        %v747 = vld [vmem:[%s285 + $0x238] sm:$0xff]
        %v748 = vld [vmem:[%s285 + $0x240] sm:$0xff]
        %v749 = vld [vmem:[%s285 + $0x248] sm:$0xff]
        %v750 = vld [vmem:[%s285 + $0x250] sm:$0xff]
        %v751 = vld [vmem:[%s285 + $0x258] sm:$0xff]
        %v752 = vld [vmem:[%s285 + $0x260] sm:$0xff]
        %v753 = vld [vmem:[%s285 + $0x268] sm:$0xff]
        %v754 = vld [vmem:[%s285 + $0x270] sm:$0xff]
        %v755 = vld [vmem:[%s285 + $0x278] sm:$0xff]
        %v756 = vld [vmem:[%s285 + $0x280] sm:$0xff]
        %v757 = vld [vmem:[%s285 + $0x288] sm:$0xff]
        %v758 = vld [vmem:[%s285 + $0x290] sm:$0xff]
        %v759 = vld [vmem:[%s285 + $0x298] sm:$0xff]
        %v760 = vld [vmem:[%s285 + $0x2a0] sm:$0xff]
        %v761 = vld [vmem:[%s285 + $0x2a8] sm:$0xff]
        %v762 = vld [vmem:[%s285 + $0x2b0] sm:$0xff]
        %v763 = vld [vmem:[%s285 + $0x2b8] sm:$0xff]
        %v764 = vld [vmem:[%s285 + $0x2c0] sm:$0xff]
        %v765 = vld [vmem:[%s285 + $0x2c8] sm:$0xff]
        %v766 = vld [vmem:[%s285 + $0x2d0] sm:$0xff]
        %v767 = vld [vmem:[%s285 + $0x2d8] sm:$0xff]
        %v768 = vld [vmem:[%s285 + $0x2e0] sm:$0xff]
        %v769 = vld [vmem:[%s285 + $0x2e8] sm:$0xff]
        %v770 = vld [vmem:[%s285 + $0x2f0] sm:$0xff]
        %v771 = vld [vmem:[%s285 + $0x2f8] sm:$0xff]
        %v772 = vld [vmem:[%s285 + $0x300] sm:$0xff]
        %v773 = vld [vmem:[%s285 + $0x308] sm:$0xff]
        %v774 = vld [vmem:[%s285 + $0x310] sm:$0xff]
        %v775 = vld [vmem:[%s285 + $0x318] sm:$0xff]
        %v776 = vld [vmem:[%s285 + $0x320] sm:$0xff]
        %v777 = vld [vmem:[%s285 + $0x328] sm:$0xff]
        %v778 = vld [vmem:[%s285 + $0x330] sm:$0xff]
        %v779 = vld [vmem:[%s285 + $0x338] sm:$0xff]
        %v780 = vld [vmem:[%s285 + $0x340] sm:$0xff]
        %v781 = vld [vmem:[%s285 + $0x348] sm:$0xff]
        %v782 = vld [vmem:[%s285 + $0x350] sm:$0xff]
        %v783 = vld [vmem:[%s285 + $0x358] sm:$0xff]
        %v784 = vld [vmem:[%s285 + $0x360] sm:$0xff]
        %v785 = vld [vmem:[%s285 + $0x368] sm:$0xff]
        %v786 = vld [vmem:[%s285 + $0x370] sm:$0xff]
        %v787 = vld [vmem:[%s285 + $0x378] sm:$0xff]
        %v788 = vld [vmem:[%s285 + $0x380] sm:$0xff]
        %v789 = vld [vmem:[%s285 + $0x388] sm:$0xff]
        %v790 = vld [vmem:[%s285 + $0x390] sm:$0xff]
        %v791 = vld [vmem:[%s285 + $0x398] sm:$0xff]
        %v792 = vld [vmem:[%s285 + $0x3a0] sm:$0xff]
        %v793 = vld [vmem:[%s285 + $0x3a8] sm:$0xff]
        %v794 = vld [vmem:[%s285 + $0x3b0] sm:$0xff]
        %v795 = vld [vmem:[%s285 + $0x3b8] sm:$0xff]
        %v796 = vld [vmem:[%s285 + $0x3c0] sm:$0xff]
        %v797 = vld [vmem:[%s285 + $0x3c8] sm:$0xff]
        %v798 = vld [vmem:[%s285 + $0x3d0] sm:$0xff]
        %v799 = vld [vmem:[%s285 + $0x3d8] sm:$0xff]
        %v800 = vld [vmem:[%s285 + $0x3e0] sm:$0xff]
        %v801 = vld [vmem:[%s285 + $0x3e8] sm:$0xff]
        %v802 = vld [vmem:[%s285 + $0x3f0] sm:$0xff]
        %v803 = vld [vmem:[%s285 + $0x3f8] sm:$0xff]
        %v804 = vld [vmem:[%s285 + $0x400] sm:$0xff]
        %v805 = vld [vmem:[%s285 + $0x408] sm:$0xff]
        %v806 = vld [vmem:[%s285 + $0x410] sm:$0xff]
        %v807 = vld [vmem:[%s285 + $0x418] sm:$0xff]
        %v808 = vld [vmem:[%s285 + $0x420] sm:$0xff]
        %v809 = vld [vmem:[%s285 + $0x428] sm:$0xff]
        %v810 = vld [vmem:[%s285 + $0x430] sm:$0xff]
        %v811 = vld [vmem:[%s285 + $0x438] sm:$0xff]
        %v812 = vld [vmem:[%s285 + $0x440] sm:$0xff]
        %v813 = vld [vmem:[%s285 + $0x448] sm:$0xff]
        %v814 = vld [vmem:[%s285 + $0x450] sm:$0xff]
        %v815 = vld [vmem:[%s285 + $0x458] sm:$0xff]
        %v816 = vld [vmem:[%s285 + $0x460] sm:$0xff]
        %v817 = vld [vmem:[%s285 + $0x468] sm:$0xff]
        %v818 = vld [vmem:[%s285 + $0x470] sm:$0xff]
        %v819 = vld [vmem:[%s285 + $0x478] sm:$0xff]
        %v820 = vld [vmem:[%s294] sm:$0xff]
        %v821 = vld [vmem:[%s294 + $0x8] sm:$0xff]
        %v822 = vld [vmem:[%s294 + $0x10] sm:$0xff]
        %v823 = vld [vmem:[%s294 + $0x18] sm:$0xff]
        %v824 = vld [vmem:[%s294 + $0x20] sm:$0xff]
        %v825 = vld [vmem:[%s294 + $0x28] sm:$0xff]
        %v826 = vld [vmem:[%s294 + $0x30] sm:$0xff]
        %v827 = vld [vmem:[%s294 + $0x38] sm:$0xff]
        %v828 = vld [vmem:[%s294 + $0x40] sm:$0xff]
        %v829 = vld [vmem:[%s294 + $0x48] sm:$0xff]
        %v830 = vld [vmem:[%s294 + $0x50] sm:$0xff]
        %v831 = vld [vmem:[%s294 + $0x58] sm:$0xff]
        %v832 = vld [vmem:[%s294 + $0x60] sm:$0xff]
        %v833 = vld [vmem:[%s294 + $0x68] sm:$0xff]
        %v834 = vld [vmem:[%s294 + $0x70] sm:$0xff]
        %v835 = vld [vmem:[%s294 + $0x78] sm:$0xff]
        %v836 = vld [vmem:[%s294 + $0x80] sm:$0xff]
        %v837 = vld [vmem:[%s294 + $0x88] sm:$0xff]
        %v838 = vld [vmem:[%s294 + $0x90] sm:$0xff]
        %v839 = vld [vmem:[%s294 + $0x98] sm:$0xff]
        %v840 = vld [vmem:[%s294 + $0xa0] sm:$0xff]
        %v841 = vld [vmem:[%s294 + $0xa8] sm:$0xff]
        %v842 = vld [vmem:[%s294 + $0xb0] sm:$0xff]
        %v843 = vld [vmem:[%s294 + $0xb8] sm:$0xff]
        %v844 = vld [vmem:[%s294 + $0xc0] sm:$0xff]
        %v845 = vld [vmem:[%s294 + $0xc8] sm:$0xff]
        %v846 = vld [vmem:[%s294 + $0xd0] sm:$0xff]
        %v847 = vld [vmem:[%s294 + $0xd8] sm:$0xff]
        %v848 = vld [vmem:[%s294 + $0xe0] sm:$0xff]
        %v849 = vld [vmem:[%s294 + $0xe8] sm:$0xff]
        %v850 = vld [vmem:[%s294 + $0xf0] sm:$0xff]
        %v851 = vld [vmem:[%s294 + $0xf8] sm:$0xff]
        %v852 = vld [vmem:[%s294 + $0x100] sm:$0xff]
        %v853 = vld [vmem:[%s294 + $0x108] sm:$0xff]
        %v854 = vld [vmem:[%s294 + $0x110] sm:$0xff]
        %v855 = vld [vmem:[%s294 + $0x118] sm:$0xff]
        %v856 = vld [vmem:[%s294 + $0x120] sm:$0xff]
        %v857 = vld [vmem:[%s294 + $0x128] sm:$0xff]
        %v858 = vld [vmem:[%s294 + $0x130] sm:$0xff]
        %v859 = vld [vmem:[%s294 + $0x138] sm:$0xff]
        %v860 = vld [vmem:[%s294 + $0x140] sm:$0xff]
        %v861 = vld [vmem:[%s294 + $0x148] sm:$0xff]
        %v862 = vld [vmem:[%s294 + $0x150] sm:$0xff]
        %v863 = vld [vmem:[%s294 + $0x158] sm:$0xff]
        %v864 = vld [vmem:[%s294 + $0x160] sm:$0xff]
        %v865 = vld [vmem:[%s294 + $0x168] sm:$0xff]
        %v866 = vld [vmem:[%s294 + $0x170] sm:$0xff]
        %v867 = vld [vmem:[%s294 + $0x178] sm:$0xff]
        %v868 = vld [vmem:[%s294 + $0x180] sm:$0xff]
        %v869 = vld [vmem:[%s294 + $0x188] sm:$0xff]
        %v870 = vld [vmem:[%s294 + $0x190] sm:$0xff]
        %v871 = vld [vmem:[%s294 + $0x198] sm:$0xff]
        %v872 = vld [vmem:[%s294 + $0x1a0] sm:$0xff]
        %v873 = vld [vmem:[%s294 + $0x1a8] sm:$0xff]
        %v874 = vld [vmem:[%s294 + $0x1b0] sm:$0xff]
        %v875 = vld [vmem:[%s294 + $0x1b8] sm:$0xff]
        %v876 = vld [vmem:[%s294 + $0x1c0] sm:$0xff]
        %v877 = vld [vmem:[%s294 + $0x1c8] sm:$0xff]
        %v878 = vld [vmem:[%s294 + $0x1d0] sm:$0xff]
        %v879 = vld [vmem:[%s294 + $0x1d8] sm:$0xff]
        %v880 = vld [vmem:[%s294 + $0x1e0] sm:$0xff]
        %v881 = vld [vmem:[%s294 + $0x1e8] sm:$0xff]
        %v882 = vld [vmem:[%s294 + $0x1f0] sm:$0xff]
        %v883 = vld [vmem:[%s294 + $0x1f8] sm:$0xff]
        %v884 = vld [vmem:[%s294 + $0x200] sm:$0xff]
        %v885 = vld [vmem:[%s294 + $0x208] sm:$0xff]
        %v886 = vld [vmem:[%s294 + $0x210] sm:$0xff]
        %v887 = vld [vmem:[%s294 + $0x218] sm:$0xff]
        %v888 = vld [vmem:[%s294 + $0x220] sm:$0xff]
        %v889 = vld [vmem:[%s294 + $0x228] sm:$0xff]
        %v890 = vld [vmem:[%s294 + $0x230] sm:$0xff]
        %v891 = vld [vmem:[%s294 + $0x238] sm:$0xff]
        %v892 = vld [vmem:[%s294 + $0x240] sm:$0xff]
        %v893 = vld [vmem:[%s294 + $0x248] sm:$0xff]
        %v894 = vld [vmem:[%s294 + $0x250] sm:$0xff]
        %v895 = vld [vmem:[%s294 + $0x258] sm:$0xff]
        %v896 = vld [vmem:[%s294 + $0x260] sm:$0xff]
        %v897 = vld [vmem:[%s294 + $0x268] sm:$0xff]
        %v898 = vld [vmem:[%s294 + $0x270] sm:$0xff]
        %v899 = vld [vmem:[%s294 + $0x278] sm:$0xff]
        %v900 = vld [vmem:[%s294 + $0x280] sm:$0xff]
        %v901 = vld [vmem:[%s294 + $0x288] sm:$0xff]
        %v902 = vld [vmem:[%s294 + $0x290] sm:$0xff]
        %v903 = vld [vmem:[%s294 + $0x298] sm:$0xff]
        %v904 = vld [vmem:[%s294 + $0x2a0] sm:$0xff]
        %v905 = vld [vmem:[%s294 + $0x2a8] sm:$0xff]
        %v906 = vld [vmem:[%s294 + $0x2b0] sm:$0xff]
        %v907 = vld [vmem:[%s294 + $0x2b8] sm:$0xff]
        %v908 = vld [vmem:[%s294 + $0x2c0] sm:$0xff]
        %v909 = vld [vmem:[%s294 + $0x2c8] sm:$0xff]
        %v910 = vld [vmem:[%s294 + $0x2d0] sm:$0xff]
        %v911 = vld [vmem:[%s294 + $0x2d8] sm:$0xff]
        %v912 = vld [vmem:[%s294 + $0x2e0] sm:$0xff]
        %v913 = vld [vmem:[%s294 + $0x2e8] sm:$0xff]
        %v914 = vld [vmem:[%s294 + $0x2f0] sm:$0xff]
        %v915 = vld [vmem:[%s294 + $0x2f8] sm:$0xff]
        %v916 = vld [vmem:[%s294 + $0x300] sm:$0xff]
        %v917 = vld [vmem:[%s294 + $0x308] sm:$0xff]
        %v918 = vld [vmem:[%s294 + $0x310] sm:$0xff]
        %v919 = vld [vmem:[%s294 + $0x318] sm:$0xff]
        %v920 = vld [vmem:[%s294 + $0x320] sm:$0xff]
        %v921 = vld [vmem:[%s294 + $0x328] sm:$0xff]
        %v922 = vld [vmem:[%s294 + $0x330] sm:$0xff]
        %v923 = vld [vmem:[%s294 + $0x338] sm:$0xff]
        %v924 = vld [vmem:[%s294 + $0x340] sm:$0xff]
        %v925 = vld [vmem:[%s294 + $0x348] sm:$0xff]
        %v926 = vld [vmem:[%s294 + $0x350] sm:$0xff]
        %v927 = vld [vmem:[%s294 + $0x358] sm:$0xff]
        %v928 = vld [vmem:[%s294 + $0x360] sm:$0xff]
        %v929 = vld [vmem:[%s294 + $0x368] sm:$0xff]
        %v930 = vld [vmem:[%s294 + $0x370] sm:$0xff]
        %v931 = vld [vmem:[%s294 + $0x378] sm:$0xff]
        %v932 = vld [vmem:[%s294 + $0x380] sm:$0xff]
        %v933 = vld [vmem:[%s294 + $0x388] sm:$0xff]
        %v934 = vld [vmem:[%s294 + $0x390] sm:$0xff]
        %v935 = vld [vmem:[%s294 + $0x398] sm:$0xff]
        %v936 = vld [vmem:[%s294 + $0x3a0] sm:$0xff]
        %v937 = vld [vmem:[%s294 + $0x3a8] sm:$0xff]
        %v938 = vld [vmem:[%s294 + $0x3b0] sm:$0xff]
        %v939 = vld [vmem:[%s294 + $0x3b8] sm:$0xff]
        %v940 = vld [vmem:[%s294 + $0x3c0] sm:$0xff]
        %v941 = vld [vmem:[%s294 + $0x3c8] sm:$0xff]
        %v942 = vld [vmem:[%s294 + $0x3d0] sm:$0xff]
        %v943 = vld [vmem:[%s294 + $0x3d8] sm:$0xff]
        %v944 = vld [vmem:[%s294 + $0x3e0] sm:$0xff]
        %v945 = vld [vmem:[%s294 + $0x3e8] sm:$0xff]
        %v946 = vld [vmem:[%s294 + $0x3f0] sm:$0xff]
        %v947 = vld [vmem:[%s294 + $0x3f8] sm:$0xff]
        %v948 = vld [vmem:[%s294 + $0x400] sm:$0xff]
        %v949 = vld [vmem:[%s294 + $0x408] sm:$0xff]
        %v950 = vld [vmem:[%s294 + $0x410] sm:$0xff]
        %v951 = vld [vmem:[%s294 + $0x418] sm:$0xff]
        %v952 = vld [vmem:[%s294 + $0x420] sm:$0xff]
        %v953 = vld [vmem:[%s294 + $0x428] sm:$0xff]
        %v954 = vld [vmem:[%s294 + $0x430] sm:$0xff]
        %v955 = vld [vmem:[%s294 + $0x438] sm:$0xff]
        %v956 = vld [vmem:[%s294 + $0x440] sm:$0xff]
        %v957 = vld [vmem:[%s294 + $0x448] sm:$0xff]
        %v958 = vld [vmem:[%s294 + $0x450] sm:$0xff]
        %v959 = vld [vmem:[%s294 + $0x458] sm:$0xff]
        %v960 = vld [vmem:[%s294 + $0x460] sm:$0xff]
        %v961 = vld [vmem:[%s294 + $0x468] sm:$0xff]
        %v962 = vld [vmem:[%s294 + $0x470] sm:$0xff]
        %v963 = vld [vmem:[%s294 + $0x478] sm:$0xff]
        %v964 = vmul.f32 %v532, 1.1111112
        %v965 = vmul.f32 %v533, 1.1111112
        %v966 = vmul.f32 %v534, 1.1111112
        %v967 = vmul.f32 %v535, 1.1111112
        %v968 = vmul.f32 %v536, 1.1111112
        %v969 = vmul.f32 %v537, 1.1111112
        %v970 = vmul.f32 %v538, 1.1111112
        %v971 = vmul.f32 %v539, 1.1111112
        %v972 = vmul.f32 %v540, 1.1111112
        %v973 = vmul.f32 %v541, 1.1111112
        %v974 = vmul.f32 %v542, 1.1111112
        %v975 = vmul.f32 %v543, 1.1111112
        %v976 = vmul.f32 %v544, 1.1111112
        %v977 = vmul.f32 %v545, 1.1111112
        %v978 = vmul.f32 %v546, 1.1111112
        %v979 = vmul.f32 %v547, 1.1111112
        %v980 = vmul.f32 %v548, 1.1111112
        %v981 = vmul.f32 %v549, 1.1111112
        %v982 = vmul.f32 %v550, 1.1111112
        %v983 = vmul.f32 %v551, 1.1111112
        %v984 = vmul.f32 %v552, 1.1111112
        %v985 = vmul.f32 %v553, 1.1111112
        %v986 = vmul.f32 %v554, 1.1111112
        %v987 = vmul.f32 %v555, 1.1111112
        %v988 = vmul.f32 %v556, 1.1111112
        %v989 = vmul.f32 %v557, 1.1111112
        %v990 = vmul.f32 %v558, 1.1111112
        %v991 = vmul.f32 %v559, 1.1111112
        %v992 = vmul.f32 %v560, 1.1111112
        %v993 = vmul.f32 %v561, 1.1111112
        %v994 = vmul.f32 %v562, 1.1111112
        %v995 = vmul.f32 %v563, 1.1111112
        %v996 = vmul.f32 %v564, 1.1111112
        %v997 = vmul.f32 %v565, 1.1111112
        %v998 = vmul.f32 %v566, 1.1111112
        %v999 = vmul.f32 %v567, 1.1111112
        %v1000 = vmul.f32 %v568, 1.1111112
        %v1001 = vmul.f32 %v569, 1.1111112
        %v1002 = vmul.f32 %v570, 1.1111112
        %v1003 = vmul.f32 %v571, 1.1111112
        %v1004 = vmul.f32 %v572, 1.1111112
        %v1005 = vmul.f32 %v573, 1.1111112
        %v1006 = vmul.f32 %v574, 1.1111112
        %v1007 = vmul.f32 %v575, 1.1111112
        %v1008 = vmul.f32 %v576, 1.1111112
        %v1009 = vmul.f32 %v577, 1.1111112
        %v1010 = vmul.f32 %v578, 1.1111112
        %v1011 = vmul.f32 %v579, 1.1111112
        %v1012 = vmul.f32 %v580, 1.1111112
        %v1013 = vmul.f32 %v581, 1.1111112
        %v1014 = vmul.f32 %v582, 1.1111112
        %v1015 = vmul.f32 %v583, 1.1111112
        %v1016 = vmul.f32 %v584, 1.1111112
        %v1017 = vmul.f32 %v585, 1.1111112
        %v1018 = vmul.f32 %v586, 1.1111112
        %v1019 = vmul.f32 %v587, 1.1111112
        %v1020 = vmul.f32 %v588, 1.1111112
        %v1021 = vmul.f32 %v589, 1.1111112
        %v1022 = vmul.f32 %v590, 1.1111112
        %v1023 = vmul.f32 %v591, 1.1111112
        %v1024 = vmul.f32 %v592, 1.1111112
        %v1025 = vmul.f32 %v593, 1.1111112
        %v1026 = vmul.f32 %v594, 1.1111112
        %v1027 = vmul.f32 %v595, 1.1111112
        %v1028 = vmul.f32 %v596, 1.1111112
        %v1029 = vmul.f32 %v597, 1.1111112
        %v1030 = vmul.f32 %v598, 1.1111112
        %v1031 = vmul.f32 %v599, 1.1111112
        %v1032 = vmul.f32 %v600, 1.1111112
        %v1033 = vmul.f32 %v601, 1.1111112
        %v1034 = vmul.f32 %v602, 1.1111112
        %v1035 = vmul.f32 %v603, 1.1111112
        %v1036 = vmul.f32 %v604, 1.1111112
        %v1037 = vmul.f32 %v605, 1.1111112
        %v1038 = vmul.f32 %v606, 1.1111112
        %v1039 = vmul.f32 %v607, 1.1111112
        %v1040 = vmul.f32 %v608, 1.1111112
        %v1041 = vmul.f32 %v609, 1.1111112
        %v1042 = vmul.f32 %v610, 1.1111112
        %v1043 = vmul.f32 %v611, 1.1111112
        %v1044 = vmul.f32 %v612, 1.1111112
        %v1045 = vmul.f32 %v613, 1.1111112
        %v1046 = vmul.f32 %v614, 1.1111112
        %v1047 = vmul.f32 %v615, 1.1111112
        %v1048 = vmul.f32 %v616, 1.1111112
        %v1049 = vmul.f32 %v617, 1.1111112
        %v1050 = vmul.f32 %v618, 1.1111112
        %v1051 = vmul.f32 %v619, 1.1111112
        %v1052 = vmul.f32 %v620, 1.1111112
        %v1053 = vmul.f32 %v621, 1.1111112
        %v1054 = vmul.f32 %v622, 1.1111112
        %v1055 = vmul.f32 %v623, 1.1111112
        %v1056 = vmul.f32 %v624, 1.1111112
        %v1057 = vmul.f32 %v625, 1.1111112
        %v1058 = vmul.f32 %v626, 1.1111112
        %v1059 = vmul.f32 %v627, 1.1111112
        %v1060 = vmul.f32 %v628, 1.1111112
        %v1061 = vmul.f32 %v629, 1.1111112
        %v1062 = vmul.f32 %v630, 1.1111112
        %v1063 = vmul.f32 %v631, 1.1111112
        %v1064 = vmul.f32 %v632, 1.1111112
        %v1065 = vmul.f32 %v633, 1.1111112
        %v1066 = vmul.f32 %v634, 1.1111112
        %v1067 = vmul.f32 %v635, 1.1111112
        %v1068 = vmul.f32 %v636, 1.1111112
        %v1069 = vmul.f32 %v637, 1.1111112
        %v1070 = vmul.f32 %v638, 1.1111112
        %v1071 = vmul.f32 %v639, 1.1111112
        %v1072 = vmul.f32 %v640, 1.1111112
        %v1073 = vmul.f32 %v641, 1.1111112
        %v1074 = vmul.f32 %v642, 1.1111112
        %v1075 = vmul.f32 %v643, 1.1111112
        %v1076 = vmul.f32 %v644, 1.1111112
        %v1077 = vmul.f32 %v645, 1.1111112
        %v1078 = vmul.f32 %v646, 1.1111112
        %v1079 = vmul.f32 %v647, 1.1111112
        %v1080 = vmul.f32 %v648, 1.1111112
        %v1081 = vmul.f32 %v649, 1.1111112
        %v1082 = vmul.f32 %v650, 1.1111112
        %v1083 = vmul.f32 %v651, 1.1111112
        %v1084 = vmul.f32 %v652, 1.1111112
        %v1085 = vmul.f32 %v653, 1.1111112
        %v1086 = vmul.f32 %v654, 1.1111112
        %v1087 = vmul.f32 %v655, 1.1111112
        %v1088 = vmul.f32 %v656, 1.1111112
        %v1089 = vmul.f32 %v657, 1.1111112
        %v1090 = vmul.f32 %v658, 1.1111112
        %v1091 = vmul.f32 %v659, 1.1111112
        %v1092 = vmul.f32 %v660, 1.1111112
        %v1093 = vmul.f32 %v661, 1.1111112
        %v1094 = vmul.f32 %v662, 1.1111112
        %v1095 = vmul.f32 %v663, 1.1111112
        %v1096 = vmul.f32 %v664, 1.1111112
        %v1097 = vmul.f32 %v665, 1.1111112
        %v1098 = vmul.f32 %v666, 1.1111112
        %v1099 = vmul.f32 %v667, 1.1111112
        %v1100 = vmul.f32 %v668, 1.1111112
        %v1101 = vmul.f32 %v669, 1.1111112
        %v1102 = vmul.f32 %v670, 1.1111112
        %v1103 = vmul.f32 %v671, 1.1111112
        %v1104 = vmul.f32 %v672, 1.1111112
        %v1105 = vmul.f32 %v673, 1.1111112
        %v1106 = vmul.f32 %v674, 1.1111112
        %v1107 = vmul.f32 %v675, 1.1111112
        %v1108 = vmul.f32 %v676, %v964
        %v1109 = vmul.f32 %v677, %v965
        %v1110 = vmul.f32 %v678, %v966
        %v1111 = vmul.f32 %v679, %v967
        %v1112 = vmul.f32 %v680, %v968
        %v1113 = vmul.f32 %v681, %v969
        %v1114 = vmul.f32 %v682, %v970
        %v1115 = vmul.f32 %v683, %v971
        %v1116 = vmul.f32 %v684, %v972
        %v1117 = vmul.f32 %v685, %v973
        %v1118 = vmul.f32 %v686, %v974
        %v1119 = vmul.f32 %v687, %v975
        %v1120 = vmul.f32 %v688, %v976
        %v1121 = vmul.f32 %v689, %v977
        %v1122 = vmul.f32 %v690, %v978
        %v1123 = vmul.f32 %v691, %v979
        %v1124 = vmul.f32 %v692, %v980
        %v1125 = vmul.f32 %v693, %v981
        %v1126 = vmul.f32 %v694, %v982
        %v1127 = vmul.f32 %v695, %v983
        %v1128 = vmul.f32 %v696, %v984
        %v1129 = vmul.f32 %v697, %v985
        %v1130 = vmul.f32 %v698, %v986
        %v1131 = vmul.f32 %v699, %v987
        %v1132 = vmul.f32 %v700, %v988
        %v1133 = vmul.f32 %v701, %v989
        %v1134 = vmul.f32 %v702, %v990
        %v1135 = vmul.f32 %v703, %v991
        %v1136 = vmul.f32 %v704, %v992
        %v1137 = vmul.f32 %v705, %v993
        %v1138 = vmul.f32 %v706, %v994
        %v1139 = vmul.f32 %v707, %v995
        %v1140 = vmul.f32 %v708, %v996
        %v1141 = vmul.f32 %v709, %v997
        %v1142 = vmul.f32 %v710, %v998
        %v1143 = vmul.f32 %v711, %v999
        %v1144 = vmul.f32 %v712, %v1000
        %v1145 = vmul.f32 %v713, %v1001
        %v1146 = vmul.f32 %v714, %v1002
        %v1147 = vmul.f32 %v715, %v1003
        %v1148 = vmul.f32 %v716, %v1004
        %v1149 = vmul.f32 %v717, %v1005
        %v1150 = vmul.f32 %v718, %v1006
        %v1151 = vmul.f32 %v719, %v1007
        %v1152 = vmul.f32 %v720, %v1008
        %v1153 = vmul.f32 %v721, %v1009
        %v1154 = vmul.f32 %v722, %v1010
        %v1155 = vmul.f32 %v723, %v1011
        %v1156 = vmul.f32 %v724, %v1012
        %v1157 = vmul.f32 %v725, %v1013
        %v1158 = vmul.f32 %v726, %v1014
        %v1159 = vmul.f32 %v727, %v1015
        %v1160 = vmul.f32 %v728, %v1016
        %v1161 = vmul.f32 %v729, %v1017
        %v1162 = vmul.f32 %v730, %v1018
        %v1163 = vmul.f32 %v731, %v1019
        %v1164 = vmul.f32 %v732, %v1020
        %v1165 = vmul.f32 %v733, %v1021
        %v1166 = vmul.f32 %v734, %v1022
        %v1167 = vmul.f32 %v735, %v1023
        %v1168 = vmul.f32 %v736, %v1024
        %v1169 = vmul.f32 %v737, %v1025
        %v1170 = vmul.f32 %v738, %v1026
        %v1171 = vmul.f32 %v739, %v1027
        %v1172 = vmul.f32 %v740, %v1028
        %v1173 = vmul.f32 %v741, %v1029
        %v1174 = vmul.f32 %v742, %v1030
        %v1175 = vmul.f32 %v743, %v1031
        %v1176 = vmul.f32 %v744, %v1032
        %v1177 = vmul.f32 %v745, %v1033
        %v1178 = vmul.f32 %v746, %v1034
        %v1179 = vmul.f32 %v747, %v1035
        %v1180 = vmul.f32 %v748, %v1036
        %v1181 = vmul.f32 %v749, %v1037
        %v1182 = vmul.f32 %v750, %v1038
        %v1183 = vmul.f32 %v751, %v1039
        %v1184 = vmul.f32 %v752, %v1040
        %v1185 = vmul.f32 %v753, %v1041
        %v1186 = vmul.f32 %v754, %v1042
        %v1187 = vmul.f32 %v755, %v1043
        %v1188 = vmul.f32 %v756, %v1044
        %v1189 = vmul.f32 %v757, %v1045
        %v1190 = vmul.f32 %v758, %v1046
        %v1191 = vmul.f32 %v759, %v1047
        %v1192 = vmul.f32 %v760, %v1048
        %v1193 = vmul.f32 %v761, %v1049
        %v1194 = vmul.f32 %v762, %v1050
        %v1195 = vmul.f32 %v763, %v1051
        %v1196 = vmul.f32 %v764, %v1052
        %v1197 = vmul.f32 %v765, %v1053
        %v1198 = vmul.f32 %v766, %v1054
        %v1199 = vmul.f32 %v767, %v1055
        %v1200 = vmul.f32 %v768, %v1056
        %v1201 = vmul.f32 %v769, %v1057
        %v1202 = vmul.f32 %v770, %v1058
        %v1203 = vmul.f32 %v771, %v1059
        %v1204 = vmul.f32 %v772, %v1060
        %v1205 = vmul.f32 %v773, %v1061
        %v1206 = vmul.f32 %v774, %v1062
        %v1207 = vmul.f32 %v775, %v1063
        %v1208 = vmul.f32 %v776, %v1064
        %v1209 = vmul.f32 %v777, %v1065
        %v1210 = vmul.f32 %v778, %v1066
        %v1211 = vmul.f32 %v779, %v1067
        %v1212 = vmul.f32 %v780, %v1068
        %v1213 = vmul.f32 %v781, %v1069
        %v1214 = vmul.f32 %v782, %v1070
        %v1215 = vmul.f32 %v783, %v1071
        %v1216 = vmul.f32 %v784, %v1072
        %v1217 = vmul.f32 %v785, %v1073
        %v1218 = vmul.f32 %v786, %v1074
        %v1219 = vmul.f32 %v787, %v1075
        %v1220 = vmul.f32 %v788, %v1076
        %v1221 = vmul.f32 %v789, %v1077
        %v1222 = vmul.f32 %v790, %v1078
        %v1223 = vmul.f32 %v791, %v1079
        %v1224 = vmul.f32 %v792, %v1080
        %v1225 = vmul.f32 %v793, %v1081
        %v1226 = vmul.f32 %v794, %v1082
        %v1227 = vmul.f32 %v795, %v1083
        %v1228 = vmul.f32 %v796, %v1084
        %v1229 = vmul.f32 %v797, %v1085
        %v1230 = vmul.f32 %v798, %v1086
        %v1231 = vmul.f32 %v799, %v1087
        %v1232 = vmul.f32 %v800, %v1088
        %v1233 = vmul.f32 %v801, %v1089
        %v1234 = vmul.f32 %v802, %v1090
        %v1235 = vmul.f32 %v803, %v1091
        %v1236 = vmul.f32 %v804, %v1092
        %v1237 = vmul.f32 %v805, %v1093
        %v1238 = vmul.f32 %v806, %v1094
        %v1239 = vmul.f32 %v807, %v1095
        %v1240 = vmul.f32 %v808, %v1096
        %v1241 = vmul.f32 %v809, %v1097
        %v1242 = vmul.f32 %v810, %v1098
        %v1243 = vmul.f32 %v811, %v1099
        %v1244 = vmul.f32 %v812, %v1100
        %v1245 = vmul.f32 %v813, %v1101
        %v1246 = vmul.f32 %v814, %v1102
        %v1247 = vmul.f32 %v815, %v1103
        %v1248 = vmul.f32 %v816, %v1104
        %v1249 = vmul.f32 %v817, %v1105
        %v1250 = vmul.f32 %v818, %v1106
        %v1251 = vmul.f32 %v819, %v1107
        %v1252 = vadd.f32 %v820, %v1108
        %v1253 = vadd.f32 %v821, %v1109
        %v1254 = vadd.f32 %v822, %v1110
        %v1255 = vadd.f32 %v823, %v1111
        %v1256 = vadd.f32 %v824, %v1112
        %v1257 = vadd.f32 %v825, %v1113
        %v1258 = vadd.f32 %v826, %v1114
        %v1259 = vadd.f32 %v827, %v1115
        %v1260 = vadd.f32 %v828, %v1116
        %v1261 = vadd.f32 %v829, %v1117
        %v1262 = vadd.f32 %v830, %v1118
        %v1263 = vadd.f32 %v831, %v1119
        %v1264 = vadd.f32 %v832, %v1120
        %v1265 = vadd.f32 %v833, %v1121
        %v1266 = vadd.f32 %v834, %v1122
        %v1267 = vadd.f32 %v835, %v1123
        %v1268 = vadd.f32 %v836, %v1124
        %v1269 = vadd.f32 %v837, %v1125
        %v1270 = vadd.f32 %v838, %v1126
        %v1271 = vadd.f32 %v839, %v1127
        %v1272 = vadd.f32 %v840, %v1128
        %v1273 = vadd.f32 %v841, %v1129
        %v1274 = vadd.f32 %v842, %v1130
        %v1275 = vadd.f32 %v843, %v1131
        %v1276 = vadd.f32 %v844, %v1132
        %v1277 = vadd.f32 %v845, %v1133
        %v1278 = vadd.f32 %v846, %v1134
        %v1279 = vadd.f32 %v847, %v1135
        %v1280 = vadd.f32 %v848, %v1136
        %v1281 = vadd.f32 %v849, %v1137
        %v1282 = vadd.f32 %v850, %v1138
        %v1283 = vadd.f32 %v851, %v1139
        %v1284 = vadd.f32 %v852, %v1140
        %v1285 = vadd.f32 %v853, %v1141
        %v1286 = vadd.f32 %v854, %v1142
        %v1287 = vadd.f32 %v855, %v1143
        %v1288 = vadd.f32 %v856, %v1144
        %v1289 = vadd.f32 %v857, %v1145
        %v1290 = vadd.f32 %v858, %v1146
        %v1291 = vadd.f32 %v859, %v1147
        %v1292 = vadd.f32 %v860, %v1148
        %v1293 = vadd.f32 %v861, %v1149
        %v1294 = vadd.f32 %v862, %v1150
        %v1295 = vadd.f32 %v863, %v1151
        %v1296 = vadd.f32 %v864, %v1152
        %v1297 = vadd.f32 %v865, %v1153
        %v1298 = vadd.f32 %v866, %v1154
        %v1299 = vadd.f32 %v867, %v1155
        %v1300 = vadd.f32 %v868, %v1156
        %v1301 = vadd.f32 %v869, %v1157
        %v1302 = vadd.f32 %v870, %v1158
        %v1303 = vadd.f32 %v871, %v1159
        %v1304 = vadd.f32 %v872, %v1160
        %v1305 = vadd.f32 %v873, %v1161
        %v1306 = vadd.f32 %v874, %v1162
        %v1307 = vadd.f32 %v875, %v1163
        %v1308 = vadd.f32 %v876, %v1164
        %v1309 = vadd.f32 %v877, %v1165
        %v1310 = vadd.f32 %v878, %v1166
        %v1311 = vadd.f32 %v879, %v1167
        %v1312 = vadd.f32 %v880, %v1168
        %v1313 = vadd.f32 %v881, %v1169
        %v1314 = vadd.f32 %v882, %v1170
        %v1315 = vadd.f32 %v883, %v1171
        %v1316 = vadd.f32 %v884, %v1172
        %v1317 = vadd.f32 %v885, %v1173
        %v1318 = vadd.f32 %v886, %v1174
        %v1319 = vadd.f32 %v887, %v1175
        %v1320 = vadd.f32 %v888, %v1176
        %v1321 = vadd.f32 %v889, %v1177
        %v1322 = vadd.f32 %v890, %v1178
        %v1323 = vadd.f32 %v891, %v1179
        %v1324 = vadd.f32 %v892, %v1180
        %v1325 = vadd.f32 %v893, %v1181
        %v1326 = vadd.f32 %v894, %v1182
        %v1327 = vadd.f32 %v895, %v1183
        %v1328 = vadd.f32 %v896, %v1184
        %v1329 = vadd.f32 %v897, %v1185
        %v1330 = vadd.f32 %v898, %v1186
        %v1331 = vadd.f32 %v899, %v1187
        %v1332 = vadd.f32 %v900, %v1188
        %v1333 = vadd.f32 %v901, %v1189
        %v1334 = vadd.f32 %v902, %v1190
        %v1335 = vadd.f32 %v903, %v1191
        %v1336 = vadd.f32 %v904, %v1192
        %v1337 = vadd.f32 %v905, %v1193
        %v1338 = vadd.f32 %v906, %v1194
        %v1339 = vadd.f32 %v907, %v1195
        %v1340 = vadd.f32 %v908, %v1196
        %v1341 = vadd.f32 %v909, %v1197
        %v1342 = vadd.f32 %v910, %v1198
        %v1343 = vadd.f32 %v911, %v1199
        %v1344 = vadd.f32 %v912, %v1200
        %v1345 = vadd.f32 %v913, %v1201
        %v1346 = vadd.f32 %v914, %v1202
        %v1347 = vadd.f32 %v915, %v1203
        %v1348 = vadd.f32 %v916, %v1204
        %v1349 = vadd.f32 %v917, %v1205
        %v1350 = vadd.f32 %v918, %v1206
        %v1351 = vadd.f32 %v919, %v1207
        %v1352 = vadd.f32 %v920, %v1208
        %v1353 = vadd.f32 %v921, %v1209
        %v1354 = vadd.f32 %v922, %v1210
        %v1355 = vadd.f32 %v923, %v1211
        %v1356 = vadd.f32 %v924, %v1212
        %v1357 = vadd.f32 %v925, %v1213
        %v1358 = vadd.f32 %v926, %v1214
        %v1359 = vadd.f32 %v927, %v1215
        %v1360 = vadd.f32 %v928, %v1216
        %v1361 = vadd.f32 %v929, %v1217
        %v1362 = vadd.f32 %v930, %v1218
        %v1363 = vadd.f32 %v931, %v1219
        %v1364 = vadd.f32 %v932, %v1220
        %v1365 = vadd.f32 %v933, %v1221
        %v1366 = vadd.f32 %v934, %v1222
        %v1367 = vadd.f32 %v935, %v1223
        %v1368 = vadd.f32 %v936, %v1224
        %v1369 = vadd.f32 %v937, %v1225
        %v1370 = vadd.f32 %v938, %v1226
        %v1371 = vadd.f32 %v939, %v1227
        %v1372 = vadd.f32 %v940, %v1228
        %v1373 = vadd.f32 %v941, %v1229
        %v1374 = vadd.f32 %v942, %v1230
        %v1375 = vadd.f32 %v943, %v1231
        %v1376 = vadd.f32 %v944, %v1232
        %v1377 = vadd.f32 %v945, %v1233
        %v1378 = vadd.f32 %v946, %v1234
        %v1379 = vadd.f32 %v947, %v1235
        %v1380 = vadd.f32 %v948, %v1236
        %v1381 = vadd.f32 %v949, %v1237
        %v1382 = vadd.f32 %v950, %v1238
        %v1383 = vadd.f32 %v951, %v1239
        %v1384 = vadd.f32 %v952, %v1240
        %v1385 = vadd.f32 %v953, %v1241
        %v1386 = vadd.f32 %v954, %v1242
        %v1387 = vadd.f32 %v955, %v1243
        %v1388 = vadd.f32 %v956, %v1244
        %v1389 = vadd.f32 %v957, %v1245
        %v1390 = vadd.f32 %v958, %v1246
        %v1391 = vadd.f32 %v959, %v1247
        %v1392 = vadd.f32 %v960, %v1248
        %v1393 = vadd.f32 %v961, %v1249
        %v1394 = vadd.f32 %v962, %v1250
        %v1395 = vadd.f32 %v963, %v1251
        %v1396 = vadd.f32 %v1252, %v1253
        %v1397 = vadd.f32 %v1396, %v1254
        %v1398 = vadd.f32 %v1397, %v1255
        %v1399 = vadd.f32 %v1398, %v1256
        %v1400 = vadd.f32 %v1399, %v1257
        %1401 = vadd.xlane.f32.xlu0 %v1400
        %v1402 = vpop.xlane.xlu0 %1401
        %v1403 = vadd.f32 %v1258, %v1259
        %v1404 = vadd.f32 %v1403, %v1260
        %v1405 = vadd.f32 %v1404, %v1261
        %v1406 = vadd.f32 %v1405, %v1262
        %v1407 = vadd.f32 %v1406, %v1263
        %1408 = vadd.xlane.f32.xlu0 %v1407
        %v1409 = vpop.xlane.xlu0 %1408
        %v1410 = vadd.f32 %v1264, %v1265
        %v1411 = vadd.f32 %v1410, %v1266
        %v1412 = vadd.f32 %v1411, %v1267
        %v1413 = vadd.f32 %v1412, %v1268
        %v1414 = vadd.f32 %v1413, %v1269
        %1415 = vadd.xlane.f32.xlu0 %v1414
        %v1416 = vpop.xlane.xlu0 %1415
        %v1417 = vadd.f32 %v1270, %v1271
        %v1418 = vadd.f32 %v1417, %v1272
        %v1419 = vadd.f32 %v1418, %v1273
        %v1420 = vadd.f32 %v1419, %v1274
        %v1421 = vadd.f32 %v1420, %v1275
        %1422 = vadd.xlane.f32.xlu0 %v1421
        %v1423 = vpop.xlane.xlu0 %1422
        %v1424 = vadd.f32 %v1276, %v1277
        %v1425 = vadd.f32 %v1424, %v1278
        %v1426 = vadd.f32 %v1425, %v1279
        %v1427 = vadd.f32 %v1426, %v1280
        %v1428 = vadd.f32 %v1427, %v1281
        %1429 = vadd.xlane.f32.xlu0 %v1428
        %v1430 = vpop.xlane.xlu0 %1429
        %v1431 = vadd.f32 %v1282, %v1283
        %v1432 = vadd.f32 %v1431, %v1284
        %v1433 = vadd.f32 %v1432, %v1285
        %v1434 = vadd.f32 %v1433, %v1286
        %v1435 = vadd.f32 %v1434, %v1287
        %1436 = vadd.xlane.f32.xlu0 %v1435
        %v1437 = vpop.xlane.xlu0 %1436
        %v1438 = vadd.f32 %v1288, %v1289
        %v1439 = vadd.f32 %v1438, %v1290
        %v1440 = vadd.f32 %v1439, %v1291
        %v1441 = vadd.f32 %v1440, %v1292
        %v1442 = vadd.f32 %v1441, %v1293
        %1443 = vadd.xlane.f32.xlu0 %v1442
        %v1444 = vpop.xlane.xlu0 %1443
        %v1445 = vadd.f32 %v1294, %v1295
        %v1446 = vadd.f32 %v1445, %v1296
        %v1447 = vadd.f32 %v1446, %v1297
        %v1448 = vadd.f32 %v1447, %v1298
        %v1449 = vadd.f32 %v1448, %v1299
        %1450 = vadd.xlane.f32.xlu0 %v1449
        %v1451 = vpop.xlane.xlu0 %1450
        %v1452 = vadd.f32 %v1300, %v1301
        %v1453 = vadd.f32 %v1452, %v1302
        %v1454 = vadd.f32 %v1453, %v1303
        %v1455 = vadd.f32 %v1454, %v1304
        %v1456 = vadd.f32 %v1455, %v1305
        %1457 = vadd.xlane.f32.xlu0 %v1456
        %v1458 = vpop.xlane.xlu0 %1457
        %v1459 = vadd.f32 %v1306, %v1307
        %v1460 = vadd.f32 %v1459, %v1308
        %v1461 = vadd.f32 %v1460, %v1309
        %v1462 = vadd.f32 %v1461, %v1310
        %v1463 = vadd.f32 %v1462, %v1311
        %1464 = vadd.xlane.f32.xlu0 %v1463
        %v1465 = vpop.xlane.xlu0 %1464
        %v1466 = vadd.f32 %v1312, %v1313
        %v1467 = vadd.f32 %v1466, %v1314
        %v1468 = vadd.f32 %v1467, %v1315
        %v1469 = vadd.f32 %v1468, %v1316
        %v1470 = vadd.f32 %v1469, %v1317
        %1471 = vadd.xlane.f32.xlu0 %v1470
        %v1472 = vpop.xlane.xlu0 %1471
        %v1473 = vadd.f32 %v1318, %v1319
        %v1474 = vadd.f32 %v1473, %v1320
        %v1475 = vadd.f32 %v1474, %v1321
        %v1476 = vadd.f32 %v1475, %v1322
        %v1477 = vadd.f32 %v1476, %v1323
        %1478 = vadd.xlane.f32.xlu0 %v1477
        %v1479 = vpop.xlane.xlu0 %1478
        %v1480 = vadd.f32 %v1324, %v1325
        %v1481 = vadd.f32 %v1480, %v1326
        %v1482 = vadd.f32 %v1481, %v1327
        %v1483 = vadd.f32 %v1482, %v1328
        %v1484 = vadd.f32 %v1483, %v1329
        %1485 = vadd.xlane.f32.xlu0 %v1484
        %v1486 = vpop.xlane.xlu0 %1485
        %v1487 = vadd.f32 %v1330, %v1331
        %v1488 = vadd.f32 %v1487, %v1332
        %v1489 = vadd.f32 %v1488, %v1333
        %v1490 = vadd.f32 %v1489, %v1334
        %v1491 = vadd.f32 %v1490, %v1335
        %1492 = vadd.xlane.f32.xlu0 %v1491
        %v1493 = vpop.xlane.xlu0 %1492
        %v1494 = vadd.f32 %v1336, %v1337
        %v1495 = vadd.f32 %v1494, %v1338
        %v1496 = vadd.f32 %v1495, %v1339
        %v1497 = vadd.f32 %v1496, %v1340
        %v1498 = vadd.f32 %v1497, %v1341
        %1499 = vadd.xlane.f32.xlu0 %v1498
        %v1500 = vpop.xlane.xlu0 %1499
        %v1501 = vadd.f32 %v1342, %v1343
        %v1502 = vadd.f32 %v1501, %v1344
        %v1503 = vadd.f32 %v1502, %v1345
        %v1504 = vadd.f32 %v1503, %v1346
        %v1505 = vadd.f32 %v1504, %v1347
        %1506 = vadd.xlane.f32.xlu0 %v1505
        %v1507 = vpop.xlane.xlu0 %1506
        %v1508 = vadd.f32 %v1348, %v1349
        %v1509 = vadd.f32 %v1508, %v1350
        %v1510 = vadd.f32 %v1509, %v1351
        %v1511 = vadd.f32 %v1510, %v1352
        %v1512 = vadd.f32 %v1511, %v1353
        %1513 = vadd.xlane.f32.xlu0 %v1512
        %v1514 = vpop.xlane.xlu0 %1513
        %v1515 = vadd.f32 %v1354, %v1355
        %v1516 = vadd.f32 %v1515, %v1356
        %v1517 = vadd.f32 %v1516, %v1357
        %v1518 = vadd.f32 %v1517, %v1358
        %v1519 = vadd.f32 %v1518, %v1359
        %1520 = vadd.xlane.f32.xlu0 %v1519
        %v1521 = vpop.xlane.xlu0 %1520
        %v1522 = vadd.f32 %v1360, %v1361
        %v1523 = vadd.f32 %v1522, %v1362
        %v1524 = vadd.f32 %v1523, %v1363
        %v1525 = vadd.f32 %v1524, %v1364
        %v1526 = vadd.f32 %v1525, %v1365
        %1527 = vadd.xlane.f32.xlu0 %v1526
        %v1528 = vpop.xlane.xlu0 %1527
        %v1529 = vadd.f32 %v1366, %v1367
        %v1530 = vadd.f32 %v1529, %v1368
        %v1531 = vadd.f32 %v1530, %v1369
        %v1532 = vadd.f32 %v1531, %v1370
        %v1533 = vadd.f32 %v1532, %v1371
        %1534 = vadd.xlane.f32.xlu0 %v1533
        %v1535 = vpop.xlane.xlu0 %1534
        %v1536 = vadd.f32 %v1372, %v1373
        %v1537 = vadd.f32 %v1536, %v1374
        %v1538 = vadd.f32 %v1537, %v1375
        %v1539 = vadd.f32 %v1538, %v1376
        %v1540 = vadd.f32 %v1539, %v1377
        %1541 = vadd.xlane.f32.xlu0 %v1540
        %v1542 = vpop.xlane.xlu0 %1541
        %v1543 = vadd.f32 %v1378, %v1379
        %v1544 = vadd.f32 %v1543, %v1380
        %v1545 = vadd.f32 %v1544, %v1381
        %v1546 = vadd.f32 %v1545, %v1382
        %v1547 = vadd.f32 %v1546, %v1383
        %1548 = vadd.xlane.f32.xlu0 %v1547
        %v1549 = vpop.xlane.xlu0 %1548
        %v1550 = vadd.f32 %v1384, %v1385
        %v1551 = vadd.f32 %v1550, %v1386
        %v1552 = vadd.f32 %v1551, %v1387
        %v1553 = vadd.f32 %v1552, %v1388
        %v1554 = vadd.f32 %v1553, %v1389
        %1555 = vadd.xlane.f32.xlu0 %v1554
        %v1556 = vpop.xlane.xlu0 %1555
        %v1557 = vadd.f32 %v1390, %v1391
        %v1558 = vadd.f32 %v1557, %v1392
        %v1559 = vadd.f32 %v1558, %v1393
        %v1560 = vadd.f32 %v1559, %v1394
        %v1561 = vadd.f32 %v1560, %v1395
        %1562 = vadd.xlane.f32.xlu0 %v1561
        %v1563 = vpop.xlane.xlu0 %1562
        %v1564 = vmul.f32 %v1252, %v1252
        %v1565 = vmul.f32 %v1253, %v1253
        %v1566 = vmul.f32 %v1254, %v1254
        %v1567 = vmul.f32 %v1255, %v1255
        %v1568 = vmul.f32 %v1256, %v1256
        %v1569 = vmul.f32 %v1257, %v1257
        %v1570 = vmul.f32 %v1258, %v1258
        %v1571 = vmul.f32 %v1259, %v1259
        %v1572 = vmul.f32 %v1260, %v1260
        %v1573 = vmul.f32 %v1261, %v1261
        %v1574 = vmul.f32 %v1262, %v1262
        %v1575 = vmul.f32 %v1263, %v1263
        %v1576 = vmul.f32 %v1264, %v1264
        %v1577 = vmul.f32 %v1265, %v1265
        %v1578 = vmul.f32 %v1266, %v1266
        %v1579 = vmul.f32 %v1267, %v1267
        %v1580 = vmul.f32 %v1268, %v1268
        %v1581 = vmul.f32 %v1269, %v1269
        %v1582 = vmul.f32 %v1270, %v1270
        %v1583 = vmul.f32 %v1271, %v1271
        %v1584 = vmul.f32 %v1272, %v1272
        %v1585 = vmul.f32 %v1273, %v1273
        %v1586 = vmul.f32 %v1274, %v1274
        %v1587 = vmul.f32 %v1275, %v1275
        %v1588 = vmul.f32 %v1276, %v1276
        %v1589 = vmul.f32 %v1277, %v1277
        %v1590 = vmul.f32 %v1278, %v1278
        %v1591 = vmul.f32 %v1279, %v1279
        %v1592 = vmul.f32 %v1280, %v1280
        %v1593 = vmul.f32 %v1281, %v1281
        %v1594 = vmul.f32 %v1282, %v1282
        %v1595 = vmul.f32 %v1283, %v1283
        %v1596 = vmul.f32 %v1284, %v1284
        %v1597 = vmul.f32 %v1285, %v1285
        %v1598 = vmul.f32 %v1286, %v1286
        %v1599 = vmul.f32 %v1287, %v1287
        %v1600 = vmul.f32 %v1288, %v1288
        %v1601 = vmul.f32 %v1289, %v1289
        %v1602 = vmul.f32 %v1290, %v1290
        %v1603 = vmul.f32 %v1291, %v1291
        %v1604 = vmul.f32 %v1292, %v1292
        %v1605 = vmul.f32 %v1293, %v1293
        %v1606 = vmul.f32 %v1294, %v1294
        %v1607 = vmul.f32 %v1295, %v1295
        %v1608 = vmul.f32 %v1296, %v1296
        %v1609 = vmul.f32 %v1297, %v1297
        %v1610 = vmul.f32 %v1298, %v1298
        %v1611 = vmul.f32 %v1299, %v1299
        %v1612 = vmul.f32 %v1300, %v1300
        %v1613 = vmul.f32 %v1301, %v1301
        %v1614 = vmul.f32 %v1302, %v1302
        %v1615 = vmul.f32 %v1303, %v1303
        %v1616 = vmul.f32 %v1304, %v1304
        %v1617 = vmul.f32 %v1305, %v1305
        %v1618 = vmul.f32 %v1306, %v1306
        %v1619 = vmul.f32 %v1307, %v1307
        %v1620 = vmul.f32 %v1308, %v1308
        %v1621 = vmul.f32 %v1309, %v1309
        %v1622 = vmul.f32 %v1310, %v1310
        %v1623 = vmul.f32 %v1311, %v1311
        %v1624 = vmul.f32 %v1312, %v1312
        %v1625 = vmul.f32 %v1313, %v1313
        %v1626 = vmul.f32 %v1314, %v1314
        %v1627 = vmul.f32 %v1315, %v1315
        %v1628 = vmul.f32 %v1316, %v1316
        %v1629 = vmul.f32 %v1317, %v1317
        %v1630 = vmul.f32 %v1318, %v1318
        %v1631 = vmul.f32 %v1319, %v1319
        %v1632 = vmul.f32 %v1320, %v1320
        %v1633 = vmul.f32 %v1321, %v1321
        %v1634 = vmul.f32 %v1322, %v1322
        %v1635 = vmul.f32 %v1323, %v1323
        %v1636 = vmul.f32 %v1324, %v1324
        %v1637 = vmul.f32 %v1325, %v1325
        %v1638 = vmul.f32 %v1326, %v1326
        %v1639 = vmul.f32 %v1327, %v1327
        %v1640 = vmul.f32 %v1328, %v1328
        %v1641 = vmul.f32 %v1329, %v1329
        %v1642 = vmul.f32 %v1330, %v1330
        %v1643 = vmul.f32 %v1331, %v1331
        %v1644 = vmul.f32 %v1332, %v1332
        %v1645 = vmul.f32 %v1333, %v1333
        %v1646 = vmul.f32 %v1334, %v1334
        %v1647 = vmul.f32 %v1335, %v1335
        %v1648 = vmul.f32 %v1336, %v1336
        %v1649 = vmul.f32 %v1337, %v1337
        %v1650 = vmul.f32 %v1338, %v1338
        %v1651 = vmul.f32 %v1339, %v1339
        %v1652 = vmul.f32 %v1340, %v1340
        %v1653 = vmul.f32 %v1341, %v1341
        %v1654 = vmul.f32 %v1342, %v1342
        %v1655 = vmul.f32 %v1343, %v1343
        %v1656 = vmul.f32 %v1344, %v1344
        %v1657 = vmul.f32 %v1345, %v1345
        %v1658 = vmul.f32 %v1346, %v1346
        %v1659 = vmul.f32 %v1347, %v1347
        %v1660 = vmul.f32 %v1348, %v1348
        %v1661 = vmul.f32 %v1349, %v1349
        %v1662 = vmul.f32 %v1350, %v1350
        %v1663 = vmul.f32 %v1351, %v1351
        %v1664 = vmul.f32 %v1352, %v1352
        %v1665 = vmul.f32 %v1353, %v1353
        %v1666 = vmul.f32 %v1354, %v1354
        %v1667 = vmul.f32 %v1355, %v1355
        %v1668 = vmul.f32 %v1356, %v1356
        %v1669 = vmul.f32 %v1357, %v1357
        %v1670 = vmul.f32 %v1358, %v1358
        %v1671 = vmul.f32 %v1359, %v1359
        %v1672 = vmul.f32 %v1360, %v1360
        %v1673 = vmul.f32 %v1361, %v1361
        %v1674 = vmul.f32 %v1362, %v1362
        %v1675 = vmul.f32 %v1363, %v1363
        %v1676 = vmul.f32 %v1364, %v1364
        %v1677 = vmul.f32 %v1365, %v1365
        %v1678 = vmul.f32 %v1366, %v1366
        %v1679 = vmul.f32 %v1367, %v1367
        %v1680 = vmul.f32 %v1368, %v1368
        %v1681 = vmul.f32 %v1369, %v1369
        %v1682 = vmul.f32 %v1370, %v1370
        %v1683 = vmul.f32 %v1371, %v1371
        %v1684 = vmul.f32 %v1372, %v1372
        %v1685 = vmul.f32 %v1373, %v1373
        %v1686 = vmul.f32 %v1374, %v1374
        %v1687 = vmul.f32 %v1375, %v1375
        %v1688 = vmul.f32 %v1376, %v1376
        %v1689 = vmul.f32 %v1377, %v1377
        %v1690 = vmul.f32 %v1378, %v1378
        %v1691 = vmul.f32 %v1379, %v1379
        %v1692 = vmul.f32 %v1380, %v1380
        %v1693 = vmul.f32 %v1381, %v1381
        %v1694 = vmul.f32 %v1382, %v1382
        %v1695 = vmul.f32 %v1383, %v1383
        %v1696 = vmul.f32 %v1384, %v1384
        %v1697 = vmul.f32 %v1385, %v1385
        %v1698 = vmul.f32 %v1386, %v1386
        %v1699 = vmul.f32 %v1387, %v1387
        %v1700 = vmul.f32 %v1388, %v1388
        %v1701 = vmul.f32 %v1389, %v1389
        %v1702 = vmul.f32 %v1390, %v1390
        %v1703 = vmul.f32 %v1391, %v1391
        %v1704 = vmul.f32 %v1392, %v1392
        %v1705 = vmul.f32 %v1393, %v1393
        %v1706 = vmul.f32 %v1394, %v1394
        %v1707 = vmul.f32 %v1395, %v1395
        %v1708 = vadd.f32 %v1564, %v1565
        %v1709 = vadd.f32 %v1708, %v1566
        %v1710 = vadd.f32 %v1709, %v1567
        %v1711 = vadd.f32 %v1710, %v1568
        %v1712 = vadd.f32 %v1711, %v1569
        %1713 = vadd.xlane.f32.xlu0 %v1712
        %v1714 = vpop.xlane.xlu0 %1713
        %v1715 = vadd.f32 %v1570, %v1571
        %v1716 = vadd.f32 %v1715, %v1572
        %v1717 = vadd.f32 %v1716, %v1573
        %v1718 = vadd.f32 %v1717, %v1574
        %v1719 = vadd.f32 %v1718, %v1575
        %1720 = vadd.xlane.f32.xlu0 %v1719
        %v1721 = vpop.xlane.xlu0 %1720
        %v1722 = vadd.f32 %v1576, %v1577
        %v1723 = vadd.f32 %v1722, %v1578
        %v1724 = vadd.f32 %v1723, %v1579
        %v1725 = vadd.f32 %v1724, %v1580
        %v1726 = vadd.f32 %v1725, %v1581
        %1727 = vadd.xlane.f32.xlu0 %v1726
        %v1728 = vpop.xlane.xlu0 %1727
        %v1729 = vadd.f32 %v1582, %v1583
        %v1730 = vadd.f32 %v1729, %v1584
        %v1731 = vadd.f32 %v1730, %v1585
        %v1732 = vadd.f32 %v1731, %v1586
        %v1733 = vadd.f32 %v1732, %v1587
        %1734 = vadd.xlane.f32.xlu0 %v1733
        %v1735 = vpop.xlane.xlu0 %1734
        %v1736 = vadd.f32 %v1588, %v1589
        %v1737 = vadd.f32 %v1736, %v1590
        %v1738 = vadd.f32 %v1737, %v1591
        %v1739 = vadd.f32 %v1738, %v1592
        %v1740 = vadd.f32 %v1739, %v1593
        %1741 = vadd.xlane.f32.xlu0 %v1740
        %v1742 = vpop.xlane.xlu0 %1741
        %v1743 = vadd.f32 %v1594, %v1595
        %v1744 = vadd.f32 %v1743, %v1596
        %v1745 = vadd.f32 %v1744, %v1597
        %v1746 = vadd.f32 %v1745, %v1598
        %v1747 = vadd.f32 %v1746, %v1599
        %1748 = vadd.xlane.f32.xlu0 %v1747
        %v1749 = vpop.xlane.xlu0 %1748
        %v1750 = vadd.f32 %v1600, %v1601
        %v1751 = vadd.f32 %v1750, %v1602
        %v1752 = vadd.f32 %v1751, %v1603
        %v1753 = vadd.f32 %v1752, %v1604
        %v1754 = vadd.f32 %v1753, %v1605
        %1755 = vadd.xlane.f32.xlu0 %v1754
        %v1756 = vpop.xlane.xlu0 %1755
        %v1757 = vadd.f32 %v1606, %v1607
        %v1758 = vadd.f32 %v1757, %v1608
        %v1759 = vadd.f32 %v1758, %v1609
        %v1760 = vadd.f32 %v1759, %v1610
        %v1761 = vadd.f32 %v1760, %v1611
        %1762 = vadd.xlane.f32.xlu0 %v1761
        %v1763 = vpop.xlane.xlu0 %1762
        %v1764 = vadd.f32 %v1612, %v1613
        %v1765 = vadd.f32 %v1764, %v1614
        %v1766 = vadd.f32 %v1765, %v1615
        %v1767 = vadd.f32 %v1766, %v1616
        %v1768 = vadd.f32 %v1767, %v1617
        %1769 = vadd.xlane.f32.xlu0 %v1768
        %v1770 = vpop.xlane.xlu0 %1769
        %v1771 = vadd.f32 %v1618, %v1619
        %v1772 = vadd.f32 %v1771, %v1620
        %v1773 = vadd.f32 %v1772, %v1621
        %v1774 = vadd.f32 %v1773, %v1622
        %v1775 = vadd.f32 %v1774, %v1623
        %1776 = vadd.xlane.f32.xlu0 %v1775
        %v1777 = vpop.xlane.xlu0 %1776
        %v1778 = vadd.f32 %v1624, %v1625
        %v1779 = vadd.f32 %v1778, %v1626
        %v1780 = vadd.f32 %v1779, %v1627
        %v1781 = vadd.f32 %v1780, %v1628
        %v1782 = vadd.f32 %v1781, %v1629
        %1783 = vadd.xlane.f32.xlu0 %v1782
        %v1784 = vpop.xlane.xlu0 %1783
        %v1785 = vadd.f32 %v1630, %v1631
        %v1786 = vadd.f32 %v1785, %v1632
        %v1787 = vadd.f32 %v1786, %v1633
        %v1788 = vadd.f32 %v1787, %v1634
        %v1789 = vadd.f32 %v1788, %v1635
        %1790 = vadd.xlane.f32.xlu0 %v1789
        %v1791 = vpop.xlane.xlu0 %1790
        %v1792 = vadd.f32 %v1636, %v1637
        %v1793 = vadd.f32 %v1792, %v1638
        %v1794 = vadd.f32 %v1793, %v1639
        %v1795 = vadd.f32 %v1794, %v1640
        %v1796 = vadd.f32 %v1795, %v1641
        %1797 = vadd.xlane.f32.xlu0 %v1796
        %v1798 = vpop.xlane.xlu0 %1797
        %v1799 = vadd.f32 %v1642, %v1643
        %v1800 = vadd.f32 %v1799, %v1644
        %v1801 = vadd.f32 %v1800, %v1645
        %v1802 = vadd.f32 %v1801, %v1646
        %v1803 = vadd.f32 %v1802, %v1647
        %1804 = vadd.xlane.f32.xlu0 %v1803
        %v1805 = vpop.xlane.xlu0 %1804
        %v1806 = vadd.f32 %v1648, %v1649
        %v1807 = vadd.f32 %v1806, %v1650
        %v1808 = vadd.f32 %v1807, %v1651
        %v1809 = vadd.f32 %v1808, %v1652
        %v1810 = vadd.f32 %v1809, %v1653
        %1811 = vadd.xlane.f32.xlu0 %v1810
        %v1812 = vpop.xlane.xlu0 %1811
        %v1813 = vadd.f32 %v1654, %v1655
        %v1814 = vadd.f32 %v1813, %v1656
        %v1815 = vadd.f32 %v1814, %v1657
        %v1816 = vadd.f32 %v1815, %v1658
        %v1817 = vadd.f32 %v1816, %v1659
        %1818 = vadd.xlane.f32.xlu0 %v1817
        %v1819 = vpop.xlane.xlu0 %1818
        %v1820 = vadd.f32 %v1660, %v1661
        %v1821 = vadd.f32 %v1820, %v1662
        %v1822 = vadd.f32 %v1821, %v1663
        %v1823 = vadd.f32 %v1822, %v1664
        %v1824 = vadd.f32 %v1823, %v1665
        %1825 = vadd.xlane.f32.xlu0 %v1824
        %v1826 = vpop.xlane.xlu0 %1825
        %v1827 = vadd.f32 %v1666, %v1667
        %v1828 = vadd.f32 %v1827, %v1668
        %v1829 = vadd.f32 %v1828, %v1669
        %v1830 = vadd.f32 %v1829, %v1670
        %v1831 = vadd.f32 %v1830, %v1671
        %1832 = vadd.xlane.f32.xlu0 %v1831
        %v1833 = vpop.xlane.xlu0 %1832
        %v1834 = vadd.f32 %v1672, %v1673
        %v1835 = vadd.f32 %v1834, %v1674
        %v1836 = vadd.f32 %v1835, %v1675
        %v1837 = vadd.f32 %v1836, %v1676
        %v1838 = vadd.f32 %v1837, %v1677
        %1839 = vadd.xlane.f32.xlu0 %v1838
        %v1840 = vpop.xlane.xlu0 %1839
        %v1841 = vadd.f32 %v1678, %v1679
        %v1842 = vadd.f32 %v1841, %v1680
        %v1843 = vadd.f32 %v1842, %v1681
        %v1844 = vadd.f32 %v1843, %v1682
        %v1845 = vadd.f32 %v1844, %v1683
        %1846 = vadd.xlane.f32.xlu0 %v1845
        %v1847 = vpop.xlane.xlu0 %1846
        %v1848 = vadd.f32 %v1684, %v1685
        %v1849 = vadd.f32 %v1848, %v1686
        %v1850 = vadd.f32 %v1849, %v1687
        %v1851 = vadd.f32 %v1850, %v1688
        %v1852 = vadd.f32 %v1851, %v1689
        %1853 = vadd.xlane.f32.xlu0 %v1852
        %v1854 = vpop.xlane.xlu0 %1853
        %v1855 = vadd.f32 %v1690, %v1691
        %v1856 = vadd.f32 %v1855, %v1692
        %v1857 = vadd.f32 %v1856, %v1693
        %v1858 = vadd.f32 %v1857, %v1694
        %v1859 = vadd.f32 %v1858, %v1695
        %1860 = vadd.xlane.f32.xlu0 %v1859
        %v1861 = vpop.xlane.xlu0 %1860
        %v1862 = vadd.f32 %v1696, %v1697
        %v1863 = vadd.f32 %v1862, %v1698
        %v1864 = vadd.f32 %v1863, %v1699
        %v1865 = vadd.f32 %v1864, %v1700
        %v1866 = vadd.f32 %v1865, %v1701
        %1867 = vadd.xlane.f32.xlu0 %v1866
        %v1868 = vpop.xlane.xlu0 %1867
        %v1869 = vadd.f32 %v1702, %v1703
        %v1870 = vadd.f32 %v1869, %v1704
        %v1871 = vadd.f32 %v1870, %v1705
        %v1872 = vadd.f32 %v1871, %v1706
        %v1873 = vadd.f32 %v1872, %v1707
        %1874 = vadd.xlane.f32.xlu0 %v1873
        %v1875 = vpop.xlane.xlu0 %1874
        %v1876 = vmul.f32 %v1402, 0.0013020834
        %v1877 = vmul.f32 %v1409, 0.0013020834
        %v1878 = vmul.f32 %v1416, 0.0013020834
        %v1879 = vmul.f32 %v1423, 0.0013020834
        %v1880 = vmul.f32 %v1430, 0.0013020834
        %v1881 = vmul.f32 %v1437, 0.0013020834
        %v1882 = vmul.f32 %v1444, 0.0013020834
        %v1883 = vmul.f32 %v1451, 0.0013020834
        %v1884 = vmul.f32 %v1458, 0.0013020834
        %v1885 = vmul.f32 %v1465, 0.0013020834
        %v1886 = vmul.f32 %v1472, 0.0013020834
        %v1887 = vmul.f32 %v1479, 0.0013020834
        %v1888 = vmul.f32 %v1486, 0.0013020834
        %v1889 = vmul.f32 %v1493, 0.0013020834
        %v1890 = vmul.f32 %v1500, 0.0013020834
        %v1891 = vmul.f32 %v1507, 0.0013020834
        %v1892 = vmul.f32 %v1514, 0.0013020834
        %v1893 = vmul.f32 %v1521, 0.0013020834
        %v1894 = vmul.f32 %v1528, 0.0013020834
        %v1895 = vmul.f32 %v1535, 0.0013020834
        %v1896 = vmul.f32 %v1542, 0.0013020834
        %v1897 = vmul.f32 %v1549, 0.0013020834
        %v1898 = vmul.f32 %v1556, 0.0013020834
        %v1899 = vmul.f32 %v1563, 0.0013020834
        %v1900 = vmul.f32 %v1714, 0.0013020834
        %v1901 = vmul.f32 %v1721, 0.0013020834
        %v1902 = vmul.f32 %v1728, 0.0013020834
        %v1903 = vmul.f32 %v1735, 0.0013020834
        %v1904 = vmul.f32 %v1742, 0.0013020834
        %v1905 = vmul.f32 %v1749, 0.0013020834
        %v1906 = vmul.f32 %v1756, 0.0013020834
        %v1907 = vmul.f32 %v1763, 0.0013020834
        %v1908 = vmul.f32 %v1770, 0.0013020834
        %v1909 = vmul.f32 %v1777, 0.0013020834
        %v1910 = vmul.f32 %v1784, 0.0013020834
        %v1911 = vmul.f32 %v1791, 0.0013020834
        %v1912 = vmul.f32 %v1798, 0.0013020834
        %v1913 = vmul.f32 %v1805, 0.0013020834
        %v1914 = vmul.f32 %v1812, 0.0013020834
        %v1915 = vmul.f32 %v1819, 0.0013020834
        %v1916 = vmul.f32 %v1826, 0.0013020834
        %v1917 = vmul.f32 %v1833, 0.0013020834
        %v1918 = vmul.f32 %v1840, 0.0013020834
        %v1919 = vmul.f32 %v1847, 0.0013020834
        %v1920 = vmul.f32 %v1854, 0.0013020834
        %v1921 = vmul.f32 %v1861, 0.0013020834
        %v1922 = vmul.f32 %v1868, 0.0013020834
        %v1923 = vmul.f32 %v1875, 0.0013020834
        %v1924 = vmul.f32 %v1876, %v1876
        %v1925 = vmul.f32 %v1877, %v1877
        %v1926 = vmul.f32 %v1878, %v1878
        %v1927 = vmul.f32 %v1879, %v1879
        %v1928 = vmul.f32 %v1880, %v1880
        %v1929 = vmul.f32 %v1881, %v1881
        %v1930 = vmul.f32 %v1882, %v1882
        %v1931 = vmul.f32 %v1883, %v1883
        %v1932 = vmul.f32 %v1884, %v1884
        %v1933 = vmul.f32 %v1885, %v1885
        %v1934 = vmul.f32 %v1886, %v1886
        %v1935 = vmul.f32 %v1887, %v1887
        %v1936 = vmul.f32 %v1888, %v1888
        %v1937 = vmul.f32 %v1889, %v1889
        %v1938 = vmul.f32 %v1890, %v1890
        %v1939 = vmul.f32 %v1891, %v1891
        %v1940 = vmul.f32 %v1892, %v1892
        %v1941 = vmul.f32 %v1893, %v1893
        %v1942 = vmul.f32 %v1894, %v1894
        %v1943 = vmul.f32 %v1895, %v1895
        %v1944 = vmul.f32 %v1896, %v1896
        %v1945 = vmul.f32 %v1897, %v1897
        %v1946 = vmul.f32 %v1898, %v1898
        %v1947 = vmul.f32 %v1899, %v1899
        %v1948 = vsub.f32 %v1900, %v1924
        %v1949 = vsub.f32 %v1901, %v1925
        %v1950 = vsub.f32 %v1902, %v1926
        %v1951 = vsub.f32 %v1903, %v1927
        %v1952 = vsub.f32 %v1904, %v1928
        %v1953 = vsub.f32 %v1905, %v1929
        %v1954 = vsub.f32 %v1906, %v1930
        %v1955 = vsub.f32 %v1907, %v1931
        %v1956 = vsub.f32 %v1908, %v1932
        %v1957 = vsub.f32 %v1909, %v1933
        %v1958 = vsub.f32 %v1910, %v1934
        %v1959 = vsub.f32 %v1911, %v1935
        %v1960 = vsub.f32 %v1912, %v1936
        %v1961 = vsub.f32 %v1913, %v1937
        %v1962 = vsub.f32 %v1914, %v1938
        %v1963 = vsub.f32 %v1915, %v1939
        %v1964 = vsub.f32 %v1916, %v1940
        %v1965 = vsub.f32 %v1917, %v1941
        %v1966 = vsub.f32 %v1918, %v1942
        %v1967 = vsub.f32 %v1919, %v1943
        %v1968 = vsub.f32 %v1920, %v1944
        %v1969 = vsub.f32 %v1921, %v1945
        %v1970 = vsub.f32 %v1922, %v1946
        %v1971 = vsub.f32 %v1923, %v1947
        %v1972 = vmax.f32 %v1948, 0.0
        %v1973 = vmax.f32 %v1949, 0.0
        %v1974 = vmax.f32 %v1950, 0.0
        %v1975 = vmax.f32 %v1951, 0.0
        %v1976 = vmax.f32 %v1952, 0.0
        %v1977 = vmax.f32 %v1953, 0.0
        %v1978 = vmax.f32 %v1954, 0.0
        %v1979 = vmax.f32 %v1955, 0.0
        %v1980 = vmax.f32 %v1956, 0.0
        %v1981 = vmax.f32 %v1957, 0.0
        %v1982 = vmax.f32 %v1958, 0.0
        %v1983 = vmax.f32 %v1959, 0.0
        %v1984 = vmax.f32 %v1960, 0.0
        %v1985 = vmax.f32 %v1961, 0.0
        %v1986 = vmax.f32 %v1962, 0.0
        %v1987 = vmax.f32 %v1963, 0.0
        %v1988 = vmax.f32 %v1964, 0.0
        %v1989 = vmax.f32 %v1965, 0.0
        %v1990 = vmax.f32 %v1966, 0.0
        %v1991 = vmax.f32 %v1967, 0.0
        %v1992 = vmax.f32 %v1968, 0.0
        %v1993 = vmax.f32 %v1969, 0.0
        %v1994 = vmax.f32 %v1970, 0.0
        %v1995 = vmax.f32 %v1971, 0.0
        %v1996 = vadd.f32 %v1972, 1e-12
        %v1997 = vadd.f32 %v1973, 1e-12
        %v1998 = vadd.f32 %v1974, 1e-12
        %v1999 = vadd.f32 %v1975, 1e-12
        %v2000 = vadd.f32 %v1976, 1e-12
        %v2001 = vadd.f32 %v1977, 1e-12
        %v2002 = vadd.f32 %v1978, 1e-12
        %v2003 = vadd.f32 %v1979, 1e-12
        %v2004 = vadd.f32 %v1980, 1e-12
        %v2005 = vadd.f32 %v1981, 1e-12
        %v2006 = vadd.f32 %v1982, 1e-12
        %v2007 = vadd.f32 %v1983, 1e-12
        %v2008 = vadd.f32 %v1984, 1e-12
        %v2009 = vadd.f32 %v1985, 1e-12
        %v2010 = vadd.f32 %v1986, 1e-12
        %v2011 = vadd.f32 %v1987, 1e-12
        %v2012 = vadd.f32 %v1988, 1e-12
        %v2013 = vadd.f32 %v1989, 1e-12
        %v2014 = vadd.f32 %v1990, 1e-12
        %v2015 = vadd.f32 %v1991, 1e-12
        %v2016 = vadd.f32 %v1992, 1e-12
        %v2017 = vadd.f32 %v1993, 1e-12
        %v2018 = vadd.f32 %v1994, 1e-12
        %v2019 = vadd.f32 %v1995, 1e-12
        %v2020 = vrsqrt.pop %v1996
        %v2021 = vrsqrt.pop %v1997
        %v2022 = vrsqrt.pop %v1998
        %v2023 = vrsqrt.pop %v1999
        %v2024 = vrsqrt.pop %v2000
        %v2025 = vrsqrt.pop %v2001
        %v2026 = vrsqrt.pop %v2002
        %v2027 = vrsqrt.pop %v2003
        %v2028 = vrsqrt.pop %v2004
        %v2029 = vrsqrt.pop %v2005
        %v2030 = vrsqrt.pop %v2006
        %v2031 = vrsqrt.pop %v2007
        %v2032 = vrsqrt.pop %v2008
        %v2033 = vrsqrt.pop %v2009
        %v2034 = vrsqrt.pop %v2010
        %v2035 = vrsqrt.pop %v2011
        %v2036 = vrsqrt.pop %v2012
        %v2037 = vrsqrt.pop %v2013
        %v2038 = vrsqrt.pop %v2014
        %v2039 = vrsqrt.pop %v2015
        %v2040 = vrsqrt.pop %v2016
        %v2041 = vrsqrt.pop %v2017
        %v2042 = vrsqrt.pop %v2018
        %v2043 = vrsqrt.pop %v2019
        %v2044 = vld [vmem:[#allocation8] sm:$0x3f]
        %v2045 = vld [vmem:[#allocation10] sm:$0x3f]
        %v2046 = vsub.f32 %v1252, %v1876
        %v2047 = vsub.f32 %v1253, %v1876
        %v2048 = vsub.f32 %v1254, %v1876
        %v2049 = vsub.f32 %v1255, %v1876
        %v2050 = vsub.f32 %v1256, %v1876
        %v2051 = vsub.f32 %v1257, %v1876
        %v2052 = vsub.f32 %v1258, %v1877
        %v2053 = vsub.f32 %v1259, %v1877
        %v2054 = vsub.f32 %v1260, %v1877
        %v2055 = vsub.f32 %v1261, %v1877
        %v2056 = vsub.f32 %v1262, %v1877
        %v2057 = vsub.f32 %v1263, %v1877
        %v2058 = vsub.f32 %v1264, %v1878
        %v2059 = vsub.f32 %v1265, %v1878
        %v2060 = vsub.f32 %v1266, %v1878
        %v2061 = vsub.f32 %v1267, %v1878
        %v2062 = vsub.f32 %v1268, %v1878
        %v2063 = vsub.f32 %v1269, %v1878
        %v2064 = vsub.f32 %v1270, %v1879
        %v2065 = vsub.f32 %v1271, %v1879
        %v2066 = vsub.f32 %v1272, %v1879
        %v2067 = vsub.f32 %v1273, %v1879
        %v2068 = vsub.f32 %v1274, %v1879
        %v2069 = vsub.f32 %v1275, %v1879
        %v2070 = vsub.f32 %v1276, %v1880
        %v2071 = vsub.f32 %v1277, %v1880
        %v2072 = vsub.f32 %v1278, %v1880
        %v2073 = vsub.f32 %v1279, %v1880
        %v2074 = vsub.f32 %v1280, %v1880
        %v2075 = vsub.f32 %v1281, %v1880
        %v2076 = vsub.f32 %v1282, %v1881
        %v2077 = vsub.f32 %v1283, %v1881
        %v2078 = vsub.f32 %v1284, %v1881
        %v2079 = vsub.f32 %v1285, %v1881
        %v2080 = vsub.f32 %v1286, %v1881
        %v2081 = vsub.f32 %v1287, %v1881
        %v2082 = vsub.f32 %v1288, %v1882
        %v2083 = vsub.f32 %v1289, %v1882
        %v2084 = vsub.f32 %v1290, %v1882
        %v2085 = vsub.f32 %v1291, %v1882
        %v2086 = vsub.f32 %v1292, %v1882
        %v2087 = vsub.f32 %v1293, %v1882
        %v2088 = vsub.f32 %v1294, %v1883
        %v2089 = vsub.f32 %v1295, %v1883
        %v2090 = vsub.f32 %v1296, %v1883
        %v2091 = vsub.f32 %v1297, %v1883
        %v2092 = vsub.f32 %v1298, %v1883
        %v2093 = vsub.f32 %v1299, %v1883
        %v2094 = vsub.f32 %v1300, %v1884
        %v2095 = vsub.f32 %v1301, %v1884
        %v2096 = vsub.f32 %v1302, %v1884
        %v2097 = vsub.f32 %v1303, %v1884
        %v2098 = vsub.f32 %v1304, %v1884
        %v2099 = vsub.f32 %v1305, %v1884
        %v2100 = vsub.f32 %v1306, %v1885
        %v2101 = vsub.f32 %v1307, %v1885
        %v2102 = vsub.f32 %v1308, %v1885
        %v2103 = vsub.f32 %v1309, %v1885
        %v2104 = vsub.f32 %v1310, %v1885
        %v2105 = vsub.f32 %v1311, %v1885
        %v2106 = vsub.f32 %v1312, %v1886
        %v2107 = vsub.f32 %v1313, %v1886
        %v2108 = vsub.f32 %v1314, %v1886
        %v2109 = vsub.f32 %v1315, %v1886
        %v2110 = vsub.f32 %v1316, %v1886
        %v2111 = vsub.f32 %v1317, %v1886
        %v2112 = vsub.f32 %v1318, %v1887
        %v2113 = vsub.f32 %v1319, %v1887
        %v2114 = vsub.f32 %v1320, %v1887
        %v2115 = vsub.f32 %v1321, %v1887
        %v2116 = vsub.f32 %v1322, %v1887
        %v2117 = vsub.f32 %v1323, %v1887
        %v2118 = vsub.f32 %v1324, %v1888
        %v2119 = vsub.f32 %v1325, %v1888
        %v2120 = vsub.f32 %v1326, %v1888
        %v2121 = vsub.f32 %v1327, %v1888
        %v2122 = vsub.f32 %v1328, %v1888
        %v2123 = vsub.f32 %v1329, %v1888
        %v2124 = vsub.f32 %v1330, %v1889
        %v2125 = vsub.f32 %v1331, %v1889
        %v2126 = vsub.f32 %v1332, %v1889
        %v2127 = vsub.f32 %v1333, %v1889
        %v2128 = vsub.f32 %v1334, %v1889
        %v2129 = vsub.f32 %v1335, %v1889
        %v2130 = vsub.f32 %v1336, %v1890
        %v2131 = vsub.f32 %v1337, %v1890
        %v2132 = vsub.f32 %v1338, %v1890
        %v2133 = vsub.f32 %v1339, %v1890
        %v2134 = vsub.f32 %v1340, %v1890
        %v2135 = vsub.f32 %v1341, %v1890
        %v2136 = vsub.f32 %v1342, %v1891
        %v2137 = vsub.f32 %v1343, %v1891
        %v2138 = vsub.f32 %v1344, %v1891
        %v2139 = vsub.f32 %v1345, %v1891
        %v2140 = vsub.f32 %v1346, %v1891
        %v2141 = vsub.f32 %v1347, %v1891
        %v2142 = vsub.f32 %v1348, %v1892
        %v2143 = vsub.f32 %v1349, %v1892
        %v2144 = vsub.f32 %v1350, %v1892
        %v2145 = vsub.f32 %v1351, %v1892
        %v2146 = vsub.f32 %v1352, %v1892
        %v2147 = vsub.f32 %v1353, %v1892
        %v2148 = vsub.f32 %v1354, %v1893
        %v2149 = vsub.f32 %v1355, %v1893
        %v2150 = vsub.f32 %v1356, %v1893
        %v2151 = vsub.f32 %v1357, %v1893
        %v2152 = vsub.f32 %v1358, %v1893
        %v2153 = vsub.f32 %v1359, %v1893
        %v2154 = vsub.f32 %v1360, %v1894
        %v2155 = vsub.f32 %v1361, %v1894
        %v2156 = vsub.f32 %v1362, %v1894
        %v2157 = vsub.f32 %v1363, %v1894
        %v2158 = vsub.f32 %v1364, %v1894
        %v2159 = vsub.f32 %v1365, %v1894
        %v2160 = vsub.f32 %v1366, %v1895
        %v2161 = vsub.f32 %v1367, %v1895
        %v2162 = vsub.f32 %v1368, %v1895
        %v2163 = vsub.f32 %v1369, %v1895
        %v2164 = vsub.f32 %v1370, %v1895
        %v2165 = vsub.f32 %v1371, %v1895
        %v2166 = vsub.f32 %v1372, %v1896
        %v2167 = vsub.f32 %v1373, %v1896
        %v2168 = vsub.f32 %v1374, %v1896
        %v2169 = vsub.f32 %v1375, %v1896
        %v2170 = vsub.f32 %v1376, %v1896
        %v2171 = vsub.f32 %v1377, %v1896
        %v2172 = vsub.f32 %v1378, %v1897
        %v2173 = vsub.f32 %v1379, %v1897
        %v2174 = vsub.f32 %v1380, %v1897
        %v2175 = vsub.f32 %v1381, %v1897
        %v2176 = vsub.f32 %v1382, %v1897
        %v2177 = vsub.f32 %v1383, %v1897
        %v2178 = vsub.f32 %v1384, %v1898
        %v2179 = vsub.f32 %v1385, %v1898
        %v2180 = vsub.f32 %v1386, %v1898
        %v2181 = vsub.f32 %v1387, %v1898
        %v2182 = vsub.f32 %v1388, %v1898
        %v2183 = vsub.f32 %v1389, %v1898
        %v2184 = vsub.f32 %v1390, %v1899
        %v2185 = vsub.f32 %v1391, %v1899
        %v2186 = vsub.f32 %v1392, %v1899
        %v2187 = vsub.f32 %v1393, %v1899
        %v2188 = vsub.f32 %v1394, %v1899
        %v2189 = vsub.f32 %v1395, %v1899
        %v2190 = vmul.f32 %v2046, %v2020
        %v2191 = vmul.f32 %v2047, %v2020
        %v2192 = vmul.f32 %v2048, %v2020
        %v2193 = vmul.f32 %v2049, %v2020
        %v2194 = vmul.f32 %v2050, %v2020
        %v2195 = vmul.f32 %v2051, %v2020
        %v2196 = vmul.f32 %v2052, %v2021
        %v2197 = vmul.f32 %v2053, %v2021
        %v2198 = vmul.f32 %v2054, %v2021
        %v2199 = vmul.f32 %v2055, %v2021
        %v2200 = vmul.f32 %v2056, %v2021
        %v2201 = vmul.f32 %v2057, %v2021
        %v2202 = vmul.f32 %v2058, %v2022
        %v2203 = vmul.f32 %v2059, %v2022
        %v2204 = vmul.f32 %v2060, %v2022
        %v2205 = vmul.f32 %v2061, %v2022
        %v2206 = vmul.f32 %v2062, %v2022
        %v2207 = vmul.f32 %v2063, %v2022
        %v2208 = vmul.f32 %v2064, %v2023
        %v2209 = vmul.f32 %v2065, %v2023
        %v2210 = vmul.f32 %v2066, %v2023
        %v2211 = vmul.f32 %v2067, %v2023
        %v2212 = vmul.f32 %v2068, %v2023
        %v2213 = vmul.f32 %v2069, %v2023
        %v2214 = vmul.f32 %v2070, %v2024
        %v2215 = vmul.f32 %v2071, %v2024
        %v2216 = vmul.f32 %v2072, %v2024
        %v2217 = vmul.f32 %v2073, %v2024
        %v2218 = vmul.f32 %v2074, %v2024
        %v2219 = vmul.f32 %v2075, %v2024
        %v2220 = vmul.f32 %v2076, %v2025
        %v2221 = vmul.f32 %v2077, %v2025
        %v2222 = vmul.f32 %v2078, %v2025
        %v2223 = vmul.f32 %v2079, %v2025
        %v2224 = vmul.f32 %v2080, %v2025
        %v2225 = vmul.f32 %v2081, %v2025
        %v2226 = vmul.f32 %v2082, %v2026
        %v2227 = vmul.f32 %v2083, %v2026
        %v2228 = vmul.f32 %v2084, %v2026
        %v2229 = vmul.f32 %v2085, %v2026
        %v2230 = vmul.f32 %v2086, %v2026
        %v2231 = vmul.f32 %v2087, %v2026
        %v2232 = vmul.f32 %v2088, %v2027
        %v2233 = vmul.f32 %v2089, %v2027
        %v2234 = vmul.f32 %v2090, %v2027
        %v2235 = vmul.f32 %v2091, %v2027
        %v2236 = vmul.f32 %v2092, %v2027
        %v2237 = vmul.f32 %v2093, %v2027
        %v2238 = vmul.f32 %v2094, %v2028
        %v2239 = vmul.f32 %v2095, %v2028
        %v2240 = vmul.f32 %v2096, %v2028
        %v2241 = vmul.f32 %v2097, %v2028
        %v2242 = vmul.f32 %v2098, %v2028
        %v2243 = vmul.f32 %v2099, %v2028
        %v2244 = vmul.f32 %v2100, %v2029
        %v2245 = vmul.f32 %v2101, %v2029
        %v2246 = vmul.f32 %v2102, %v2029
        %v2247 = vmul.f32 %v2103, %v2029
        %v2248 = vmul.f32 %v2104, %v2029
        %v2249 = vmul.f32 %v2105, %v2029
        %v2250 = vmul.f32 %v2106, %v2030
        %v2251 = vmul.f32 %v2107, %v2030
        %v2252 = vmul.f32 %v2108, %v2030
        %v2253 = vmul.f32 %v2109, %v2030
        %v2254 = vmul.f32 %v2110, %v2030
        %v2255 = vmul.f32 %v2111, %v2030
        %v2256 = vmul.f32 %v2112, %v2031
        %v2257 = vmul.f32 %v2113, %v2031
        %v2258 = vmul.f32 %v2114, %v2031
        %v2259 = vmul.f32 %v2115, %v2031
        %v2260 = vmul.f32 %v2116, %v2031
        %v2261 = vmul.f32 %v2117, %v2031
        %v2262 = vmul.f32 %v2118, %v2032
        %v2263 = vmul.f32 %v2119, %v2032
        %v2264 = vmul.f32 %v2120, %v2032
        %v2265 = vmul.f32 %v2121, %v2032
        %v2266 = vmul.f32 %v2122, %v2032
        %v2267 = vmul.f32 %v2123, %v2032
        %v2268 = vmul.f32 %v2124, %v2033
        %v2269 = vmul.f32 %v2125, %v2033
        %v2270 = vmul.f32 %v2126, %v2033
        %v2271 = vmul.f32 %v2127, %v2033
        %v2272 = vmul.f32 %v2128, %v2033
        %v2273 = vmul.f32 %v2129, %v2033
        %v2274 = vmul.f32 %v2130, %v2034
        %v2275 = vmul.f32 %v2131, %v2034
        %v2276 = vmul.f32 %v2132, %v2034
        %v2277 = vmul.f32 %v2133, %v2034
        %v2278 = vmul.f32 %v2134, %v2034
        %v2279 = vmul.f32 %v2135, %v2034
        %v2280 = vmul.f32 %v2136, %v2035
        %v2281 = vmul.f32 %v2137, %v2035
        %v2282 = vmul.f32 %v2138, %v2035
        %v2283 = vmul.f32 %v2139, %v2035
        %v2284 = vmul.f32 %v2140, %v2035
        %v2285 = vmul.f32 %v2141, %v2035
        %v2286 = vmul.f32 %v2142, %v2036
        %v2287 = vmul.f32 %v2143, %v2036
        %v2288 = vmul.f32 %v2144, %v2036
        %v2289 = vmul.f32 %v2145, %v2036
        %v2290 = vmul.f32 %v2146, %v2036
        %v2291 = vmul.f32 %v2147, %v2036
        %v2292 = vmul.f32 %v2148, %v2037
        %v2293 = vmul.f32 %v2149, %v2037
        %v2294 = vmul.f32 %v2150, %v2037
        %v2295 = vmul.f32 %v2151, %v2037
        %v2296 = vmul.f32 %v2152, %v2037
        %v2297 = vmul.f32 %v2153, %v2037
        %v2298 = vmul.f32 %v2154, %v2038
        %v2299 = vmul.f32 %v2155, %v2038
        %v2300 = vmul.f32 %v2156, %v2038
        %v2301 = vmul.f32 %v2157, %v2038
        %v2302 = vmul.f32 %v2158, %v2038
        %v2303 = vmul.f32 %v2159, %v2038
        %v2304 = vmul.f32 %v2160, %v2039
        %v2305 = vmul.f32 %v2161, %v2039
        %v2306 = vmul.f32 %v2162, %v2039
        %v2307 = vmul.f32 %v2163, %v2039
        %v2308 = vmul.f32 %v2164, %v2039
        %v2309 = vmul.f32 %v2165, %v2039
        %v2310 = vmul.f32 %v2166, %v2040
        %v2311 = vmul.f32 %v2167, %v2040
        %v2312 = vmul.f32 %v2168, %v2040
        %v2313 = vmul.f32 %v2169, %v2040
        %v2314 = vmul.f32 %v2170, %v2040
        %v2315 = vmul.f32 %v2171, %v2040
        %v2316 = vmul.f32 %v2172, %v2041
        %v2317 = vmul.f32 %v2173, %v2041
        %v2318 = vmul.f32 %v2174, %v2041
        %v2319 = vmul.f32 %v2175, %v2041
        %v2320 = vmul.f32 %v2176, %v2041
        %v2321 = vmul.f32 %v2177, %v2041
        %v2322 = vmul.f32 %v2178, %v2042
        %v2323 = vmul.f32 %v2179, %v2042
        %v2324 = vmul.f32 %v2180, %v2042
        %v2325 = vmul.f32 %v2181, %v2042
        %v2326 = vmul.f32 %v2182, %v2042
        %v2327 = vmul.f32 %v2183, %v2042
        %v2328 = vmul.f32 %v2184, %v2043
        %v2329 = vmul.f32 %v2185, %v2043
        %v2330 = vmul.f32 %v2186, %v2043
        %v2331 = vmul.f32 %v2187, %v2043
        %v2332 = vmul.f32 %v2188, %v2043
        %v2333 = vmul.f32 %v2189, %v2043
        %v2335 = vlaneseq
        %v2336 = vshrl.u32 %v2335, 7
        %v2337 = vsub.s32 0, %v2336
        %v2338 = vrot.slane %v2044, %v2337
        %v2339 = vlaneseq
        %v2340 = vshrl.u32 %v2339, 7
        %v2341 = vsub.s32 1, %v2340
        %v2342 = vrot.slane %v2044, %v2341
        %v2343 = vlaneseq
        %v2344 = vshrl.u32 %v2343, 7
        %v2345 = vsub.s32 2, %v2344
        %v2346 = vrot.slane %v2044, %v2345
        %v2347 = vlaneseq
        %v2348 = vshrl.u32 %v2347, 7
        %v2349 = vsub.s32 3, %v2348
        %v2350 = vrot.slane %v2044, %v2349
        %v2351 = vlaneseq
        %v2352 = vshrl.u32 %v2351, 7
        %v2353 = vsub.s32 4, %v2352
        %v2354 = vrot.slane %v2044, %v2353
        %v2355 = vlaneseq
        %v2356 = vshrl.u32 %v2355, 7
        %v2357 = vsub.s32 5, %v2356
        %v2358 = vrot.slane %v2044, %v2357
        %v2365 = vmul.f32 %v2190, %v2338
        %v2366 = vmul.f32 %v2191, %v2342
        %v2367 = vmul.f32 %v2192, %v2346
        %v2368 = vmul.f32 %v2193, %v2350
        %v2369 = vmul.f32 %v2194, %v2354
        %v2370 = vmul.f32 %v2195, %v2358
        %v2371 = vmul.f32 %v2196, %v2338
        %v2372 = vmul.f32 %v2197, %v2342
        %v2373 = vmul.f32 %v2198, %v2346
        %v2374 = vmul.f32 %v2199, %v2350
        %v2375 = vmul.f32 %v2200, %v2354
        %v2376 = vmul.f32 %v2201, %v2358
        %v2377 = vmul.f32 %v2202, %v2338
        %v2378 = vmul.f32 %v2203, %v2342
        %v2379 = vmul.f32 %v2204, %v2346
        %v2380 = vmul.f32 %v2205, %v2350
        %v2381 = vmul.f32 %v2206, %v2354
        %v2382 = vmul.f32 %v2207, %v2358
        %v2383 = vmul.f32 %v2208, %v2338
        %v2384 = vmul.f32 %v2209, %v2342
        %v2385 = vmul.f32 %v2210, %v2346
        %v2386 = vmul.f32 %v2211, %v2350
        %v2387 = vmul.f32 %v2212, %v2354
        %v2388 = vmul.f32 %v2213, %v2358
        %v2389 = vmul.f32 %v2214, %v2338
        %v2390 = vmul.f32 %v2215, %v2342
        %v2391 = vmul.f32 %v2216, %v2346
        %v2392 = vmul.f32 %v2217, %v2350
        %v2393 = vmul.f32 %v2218, %v2354
        %v2394 = vmul.f32 %v2219, %v2358
        %v2395 = vmul.f32 %v2220, %v2338
        %v2396 = vmul.f32 %v2221, %v2342
        %v2397 = vmul.f32 %v2222, %v2346
        %v2398 = vmul.f32 %v2223, %v2350
        %v2399 = vmul.f32 %v2224, %v2354
        %v2400 = vmul.f32 %v2225, %v2358
        %v2401 = vmul.f32 %v2226, %v2338
        %v2402 = vmul.f32 %v2227, %v2342
        %v2403 = vmul.f32 %v2228, %v2346
        %v2404 = vmul.f32 %v2229, %v2350
        %v2405 = vmul.f32 %v2230, %v2354
        %v2406 = vmul.f32 %v2231, %v2358
        %v2407 = vmul.f32 %v2232, %v2338
        %v2408 = vmul.f32 %v2233, %v2342
        %v2409 = vmul.f32 %v2234, %v2346
        %v2410 = vmul.f32 %v2235, %v2350
        %v2411 = vmul.f32 %v2236, %v2354
        %v2412 = vmul.f32 %v2237, %v2358
        %v2413 = vmul.f32 %v2238, %v2338
        %v2414 = vmul.f32 %v2239, %v2342
        %v2415 = vmul.f32 %v2240, %v2346
        %v2416 = vmul.f32 %v2241, %v2350
        %v2417 = vmul.f32 %v2242, %v2354
        %v2418 = vmul.f32 %v2243, %v2358
        %v2419 = vmul.f32 %v2244, %v2338
        %v2420 = vmul.f32 %v2245, %v2342
        %v2421 = vmul.f32 %v2246, %v2346
        %v2422 = vmul.f32 %v2247, %v2350
        %v2423 = vmul.f32 %v2248, %v2354
        %v2424 = vmul.f32 %v2249, %v2358
        %v2425 = vmul.f32 %v2250, %v2338
        %v2426 = vmul.f32 %v2251, %v2342
        %v2427 = vmul.f32 %v2252, %v2346
        %v2428 = vmul.f32 %v2253, %v2350
        %v2429 = vmul.f32 %v2254, %v2354
        %v2430 = vmul.f32 %v2255, %v2358
        %v2431 = vmul.f32 %v2256, %v2338
        %v2432 = vmul.f32 %v2257, %v2342
        %v2433 = vmul.f32 %v2258, %v2346
        %v2434 = vmul.f32 %v2259, %v2350
        %v2435 = vmul.f32 %v2260, %v2354
        %v2436 = vmul.f32 %v2261, %v2358
        %v2437 = vmul.f32 %v2262, %v2338
        %v2438 = vmul.f32 %v2263, %v2342
        %v2439 = vmul.f32 %v2264, %v2346
        %v2440 = vmul.f32 %v2265, %v2350
        %v2441 = vmul.f32 %v2266, %v2354
        %v2442 = vmul.f32 %v2267, %v2358
        %v2443 = vmul.f32 %v2268, %v2338
        %v2444 = vmul.f32 %v2269, %v2342
        %v2445 = vmul.f32 %v2270, %v2346
        %v2446 = vmul.f32 %v2271, %v2350
        %v2447 = vmul.f32 %v2272, %v2354
        %v2448 = vmul.f32 %v2273, %v2358
        %v2449 = vmul.f32 %v2274, %v2338
        %v2450 = vmul.f32 %v2275, %v2342
        %v2451 = vmul.f32 %v2276, %v2346
        %v2452 = vmul.f32 %v2277, %v2350
        %v2453 = vmul.f32 %v2278, %v2354
        %v2454 = vmul.f32 %v2279, %v2358
        %v2455 = vmul.f32 %v2280, %v2338
        %v2456 = vmul.f32 %v2281, %v2342
        %v2457 = vmul.f32 %v2282, %v2346
        %v2458 = vmul.f32 %v2283, %v2350
        %v2459 = vmul.f32 %v2284, %v2354
        %v2460 = vmul.f32 %v2285, %v2358
        %v2461 = vmul.f32 %v2286, %v2338
        %v2462 = vmul.f32 %v2287, %v2342
        %v2463 = vmul.f32 %v2288, %v2346
        %v2464 = vmul.f32 %v2289, %v2350
        %v2465 = vmul.f32 %v2290, %v2354
        %v2466 = vmul.f32 %v2291, %v2358
        %v2467 = vmul.f32 %v2292, %v2338
        %v2468 = vmul.f32 %v2293, %v2342
        %v2469 = vmul.f32 %v2294, %v2346
        %v2470 = vmul.f32 %v2295, %v2350
        %v2471 = vmul.f32 %v2296, %v2354
        %v2472 = vmul.f32 %v2297, %v2358
        %v2473 = vmul.f32 %v2298, %v2338
        %v2474 = vmul.f32 %v2299, %v2342
        %v2475 = vmul.f32 %v2300, %v2346
        %v2476 = vmul.f32 %v2301, %v2350
        %v2477 = vmul.f32 %v2302, %v2354
        %v2478 = vmul.f32 %v2303, %v2358
        %v2479 = vmul.f32 %v2304, %v2338
        %v2480 = vmul.f32 %v2305, %v2342
        %v2481 = vmul.f32 %v2306, %v2346
        %v2482 = vmul.f32 %v2307, %v2350
        %v2483 = vmul.f32 %v2308, %v2354
        %v2484 = vmul.f32 %v2309, %v2358
        %v2485 = vmul.f32 %v2310, %v2338
        %v2486 = vmul.f32 %v2311, %v2342
        %v2487 = vmul.f32 %v2312, %v2346
        %v2488 = vmul.f32 %v2313, %v2350
        %v2489 = vmul.f32 %v2314, %v2354
        %v2490 = vmul.f32 %v2315, %v2358
        %v2491 = vmul.f32 %v2316, %v2338
        %v2492 = vmul.f32 %v2317, %v2342
        %v2493 = vmul.f32 %v2318, %v2346
        %v2494 = vmul.f32 %v2319, %v2350
        %v2495 = vmul.f32 %v2320, %v2354
        %v2496 = vmul.f32 %v2321, %v2358
        %v2497 = vmul.f32 %v2322, %v2338
        %v2498 = vmul.f32 %v2323, %v2342
        %v2499 = vmul.f32 %v2324, %v2346
        %v2500 = vmul.f32 %v2325, %v2350
        %v2501 = vmul.f32 %v2326, %v2354
        %v2502 = vmul.f32 %v2327, %v2358
        %v2503 = vmul.f32 %v2328, %v2338
        %v2504 = vmul.f32 %v2329, %v2342
        %v2505 = vmul.f32 %v2330, %v2346
        %v2506 = vmul.f32 %v2331, %v2350
        %v2507 = vmul.f32 %v2332, %v2354
        %v2508 = vmul.f32 %v2333, %v2358
        %v2510 = vlaneseq
        %v2511 = vshrl.u32 %v2510, 7
        %v2512 = vsub.s32 0, %v2511
        %v2513 = vrot.slane %v2045, %v2512
        %v2514 = vlaneseq
        %v2515 = vshrl.u32 %v2514, 7
        %v2516 = vsub.s32 1, %v2515
        %v2517 = vrot.slane %v2045, %v2516
        %v2518 = vlaneseq
        %v2519 = vshrl.u32 %v2518, 7
        %v2520 = vsub.s32 2, %v2519
        %v2521 = vrot.slane %v2045, %v2520
        %v2522 = vlaneseq
        %v2523 = vshrl.u32 %v2522, 7
        %v2524 = vsub.s32 3, %v2523
        %v2525 = vrot.slane %v2045, %v2524
        %v2526 = vlaneseq
        %v2527 = vshrl.u32 %v2526, 7
        %v2528 = vsub.s32 4, %v2527
        %v2529 = vrot.slane %v2045, %v2528
        %v2530 = vlaneseq
        %v2531 = vshrl.u32 %v2530, 7
        %v2532 = vsub.s32 5, %v2531
        %v2533 = vrot.slane %v2045, %v2532
        %v2540 = vadd.f32 %v2365, %v2513
        %v2541 = vadd.f32 %v2366, %v2517
        %v2542 = vadd.f32 %v2367, %v2521
        %v2543 = vadd.f32 %v2368, %v2525
        %v2544 = vadd.f32 %v2369, %v2529
        %v2545 = vadd.f32 %v2370, %v2533
        %v2546 = vadd.f32 %v2371, %v2513
        %v2547 = vadd.f32 %v2372, %v2517
        %v2548 = vadd.f32 %v2373, %v2521
        %v2549 = vadd.f32 %v2374, %v2525
        %v2550 = vadd.f32 %v2375, %v2529
        %v2551 = vadd.f32 %v2376, %v2533
        %v2552 = vadd.f32 %v2377, %v2513
        %v2553 = vadd.f32 %v2378, %v2517
        %v2554 = vadd.f32 %v2379, %v2521
        %v2555 = vadd.f32 %v2380, %v2525
        %v2556 = vadd.f32 %v2381, %v2529
        %v2557 = vadd.f32 %v2382, %v2533
        %v2558 = vadd.f32 %v2383, %v2513
        %v2559 = vadd.f32 %v2384, %v2517
        %v2560 = vadd.f32 %v2385, %v2521
        %v2561 = vadd.f32 %v2386, %v2525
        %v2562 = vadd.f32 %v2387, %v2529
        %v2563 = vadd.f32 %v2388, %v2533
        %v2564 = vadd.f32 %v2389, %v2513
        %v2565 = vadd.f32 %v2390, %v2517
        %v2566 = vadd.f32 %v2391, %v2521
        %v2567 = vadd.f32 %v2392, %v2525
        %v2568 = vadd.f32 %v2393, %v2529
        %v2569 = vadd.f32 %v2394, %v2533
        %v2570 = vadd.f32 %v2395, %v2513
        %v2571 = vadd.f32 %v2396, %v2517
        %v2572 = vadd.f32 %v2397, %v2521
        %v2573 = vadd.f32 %v2398, %v2525
        %v2574 = vadd.f32 %v2399, %v2529
        %v2575 = vadd.f32 %v2400, %v2533
        %v2576 = vadd.f32 %v2401, %v2513
        %v2577 = vadd.f32 %v2402, %v2517
        %v2578 = vadd.f32 %v2403, %v2521
        %v2579 = vadd.f32 %v2404, %v2525
        %v2580 = vadd.f32 %v2405, %v2529
        %v2581 = vadd.f32 %v2406, %v2533
        %v2582 = vadd.f32 %v2407, %v2513
        %v2583 = vadd.f32 %v2408, %v2517
        %v2584 = vadd.f32 %v2409, %v2521
        %v2585 = vadd.f32 %v2410, %v2525
        %v2586 = vadd.f32 %v2411, %v2529
        %v2587 = vadd.f32 %v2412, %v2533
        %v2588 = vadd.f32 %v2413, %v2513
        %v2589 = vadd.f32 %v2414, %v2517
        %v2590 = vadd.f32 %v2415, %v2521
        %v2591 = vadd.f32 %v2416, %v2525
        %v2592 = vadd.f32 %v2417, %v2529
        %v2593 = vadd.f32 %v2418, %v2533
        %v2594 = vadd.f32 %v2419, %v2513
        %v2595 = vadd.f32 %v2420, %v2517
        %v2596 = vadd.f32 %v2421, %v2521
        %v2597 = vadd.f32 %v2422, %v2525
        %v2598 = vadd.f32 %v2423, %v2529
        %v2599 = vadd.f32 %v2424, %v2533
        %v2600 = vadd.f32 %v2425, %v2513
        %v2601 = vadd.f32 %v2426, %v2517
        %v2602 = vadd.f32 %v2427, %v2521
        %v2603 = vadd.f32 %v2428, %v2525
        %v2604 = vadd.f32 %v2429, %v2529
        %v2605 = vadd.f32 %v2430, %v2533
        %v2606 = vadd.f32 %v2431, %v2513
        %v2607 = vadd.f32 %v2432, %v2517
        %v2608 = vadd.f32 %v2433, %v2521
        %v2609 = vadd.f32 %v2434, %v2525
        %v2610 = vadd.f32 %v2435, %v2529
        %v2611 = vadd.f32 %v2436, %v2533
        %v2612 = vadd.f32 %v2437, %v2513
        %v2613 = vadd.f32 %v2438, %v2517
        %v2614 = vadd.f32 %v2439, %v2521
        %v2615 = vadd.f32 %v2440, %v2525
        %v2616 = vadd.f32 %v2441, %v2529
        %v2617 = vadd.f32 %v2442, %v2533
        %v2618 = vadd.f32 %v2443, %v2513
        %v2619 = vadd.f32 %v2444, %v2517
        %v2620 = vadd.f32 %v2445, %v2521
        %v2621 = vadd.f32 %v2446, %v2525
        %v2622 = vadd.f32 %v2447, %v2529
        %v2623 = vadd.f32 %v2448, %v2533
        %v2624 = vadd.f32 %v2449, %v2513
        %v2625 = vadd.f32 %v2450, %v2517
        %v2626 = vadd.f32 %v2451, %v2521
        %v2627 = vadd.f32 %v2452, %v2525
        %v2628 = vadd.f32 %v2453, %v2529
        %v2629 = vadd.f32 %v2454, %v2533
        %v2630 = vadd.f32 %v2455, %v2513
        %v2631 = vadd.f32 %v2456, %v2517
        %v2632 = vadd.f32 %v2457, %v2521
        %v2633 = vadd.f32 %v2458, %v2525
        %v2634 = vadd.f32 %v2459, %v2529
        %v2635 = vadd.f32 %v2460, %v2533
        %v2636 = vadd.f32 %v2461, %v2513
        %v2637 = vadd.f32 %v2462, %v2517
        %v2638 = vadd.f32 %v2463, %v2521
        %v2639 = vadd.f32 %v2464, %v2525
        %v2640 = vadd.f32 %v2465, %v2529
        %v2641 = vadd.f32 %v2466, %v2533
        %v2642 = vadd.f32 %v2467, %v2513
        %v2643 = vadd.f32 %v2468, %v2517
        %v2644 = vadd.f32 %v2469, %v2521
        %v2645 = vadd.f32 %v2470, %v2525
        %v2646 = vadd.f32 %v2471, %v2529
        %v2647 = vadd.f32 %v2472, %v2533
        %v2648 = vadd.f32 %v2473, %v2513
        %v2649 = vadd.f32 %v2474, %v2517
        %v2650 = vadd.f32 %v2475, %v2521
        %v2651 = vadd.f32 %v2476, %v2525
        %v2652 = vadd.f32 %v2477, %v2529
        %v2653 = vadd.f32 %v2478, %v2533
        %v2654 = vadd.f32 %v2479, %v2513
        %v2655 = vadd.f32 %v2480, %v2517
        %v2656 = vadd.f32 %v2481, %v2521
        %v2657 = vadd.f32 %v2482, %v2525
        %v2658 = vadd.f32 %v2483, %v2529
        %v2659 = vadd.f32 %v2484, %v2533
        %v2660 = vadd.f32 %v2485, %v2513
        %v2661 = vadd.f32 %v2486, %v2517
        %v2662 = vadd.f32 %v2487, %v2521
        %v2663 = vadd.f32 %v2488, %v2525
        %v2664 = vadd.f32 %v2489, %v2529
        %v2665 = vadd.f32 %v2490, %v2533
        %v2666 = vadd.f32 %v2491, %v2513
        %v2667 = vadd.f32 %v2492, %v2517
        %v2668 = vadd.f32 %v2493, %v2521
        %v2669 = vadd.f32 %v2494, %v2525
        %v2670 = vadd.f32 %v2495, %v2529
        %v2671 = vadd.f32 %v2496, %v2533
        %v2672 = vadd.f32 %v2497, %v2513
        %v2673 = vadd.f32 %v2498, %v2517
        %v2674 = vadd.f32 %v2499, %v2521
        %v2675 = vadd.f32 %v2500, %v2525
        %v2676 = vadd.f32 %v2501, %v2529
        %v2677 = vadd.f32 %v2502, %v2533
        %v2678 = vadd.f32 %v2503, %v2513
        %v2679 = vadd.f32 %v2504, %v2517
        %v2680 = vadd.f32 %v2505, %v2521
        %v2681 = vadd.f32 %v2506, %v2525
        %v2682 = vadd.f32 %v2507, %v2529
        %v2683 = vadd.f32 %v2508, %v2533
        %2684 = vst [vmem:[%s347] sm:$0xff] %v2540
        %2685 = vst [vmem:[%s347 + $0x8] sm:$0xff] %v2541
        %2686 = vst [vmem:[%s347 + $0x10] sm:$0xff] %v2542
        %2687 = vst [vmem:[%s347 + $0x18] sm:$0xff] %v2543
        %2688 = vst [vmem:[%s347 + $0x20] sm:$0xff] %v2544
        %2689 = vst [vmem:[%s347 + $0x28] sm:$0xff] %v2545
        %2690 = vst [vmem:[%s347 + $0x30] sm:$0xff] %v2546
        %2691 = vst [vmem:[%s347 + $0x38] sm:$0xff] %v2547
        %2692 = vst [vmem:[%s347 + $0x40] sm:$0xff] %v2548
        %2693 = vst [vmem:[%s347 + $0x48] sm:$0xff] %v2549
        %2694 = vst [vmem:[%s347 + $0x50] sm:$0xff] %v2550
        %2695 = vst [vmem:[%s347 + $0x58] sm:$0xff] %v2551
        %2696 = vst [vmem:[%s347 + $0x60] sm:$0xff] %v2552
        %2697 = vst [vmem:[%s347 + $0x68] sm:$0xff] %v2553
        %2698 = vst [vmem:[%s347 + $0x70] sm:$0xff] %v2554
        %2699 = vst [vmem:[%s347 + $0x78] sm:$0xff] %v2555
        %2700 = vst [vmem:[%s347 + $0x80] sm:$0xff] %v2556
        %2701 = vst [vmem:[%s347 + $0x88] sm:$0xff] %v2557
        %2702 = vst [vmem:[%s347 + $0x90] sm:$0xff] %v2558
        %2703 = vst [vmem:[%s347 + $0x98] sm:$0xff] %v2559
        %2704 = vst [vmem:[%s347 + $0xa0] sm:$0xff] %v2560
        %2705 = vst [vmem:[%s347 + $0xa8] sm:$0xff] %v2561
        %2706 = vst [vmem:[%s347 + $0xb0] sm:$0xff] %v2562
        %2707 = vst [vmem:[%s347 + $0xb8] sm:$0xff] %v2563
        %2708 = vst [vmem:[%s347 + $0xc0] sm:$0xff] %v2564
        %2709 = vst [vmem:[%s347 + $0xc8] sm:$0xff] %v2565
        %2710 = vst [vmem:[%s347 + $0xd0] sm:$0xff] %v2566
        %2711 = vst [vmem:[%s347 + $0xd8] sm:$0xff] %v2567
        %2712 = vst [vmem:[%s347 + $0xe0] sm:$0xff] %v2568
        %2713 = vst [vmem:[%s347 + $0xe8] sm:$0xff] %v2569
        %2714 = vst [vmem:[%s347 + $0xf0] sm:$0xff] %v2570
        %2715 = vst [vmem:[%s347 + $0xf8] sm:$0xff] %v2571
        %2716 = vst [vmem:[%s347 + $0x100] sm:$0xff] %v2572
        %2717 = vst [vmem:[%s347 + $0x108] sm:$0xff] %v2573
        %2718 = vst [vmem:[%s347 + $0x110] sm:$0xff] %v2574
        %2719 = vst [vmem:[%s347 + $0x118] sm:$0xff] %v2575
        %2720 = vst [vmem:[%s347 + $0x120] sm:$0xff] %v2576
        %2721 = vst [vmem:[%s347 + $0x128] sm:$0xff] %v2577
        %2722 = vst [vmem:[%s347 + $0x130] sm:$0xff] %v2578
        %2723 = vst [vmem:[%s347 + $0x138] sm:$0xff] %v2579
        %2724 = vst [vmem:[%s347 + $0x140] sm:$0xff] %v2580
        %2725 = vst [vmem:[%s347 + $0x148] sm:$0xff] %v2581
        %2726 = vst [vmem:[%s347 + $0x150] sm:$0xff] %v2582
        %2727 = vst [vmem:[%s347 + $0x158] sm:$0xff] %v2583
        %2728 = vst [vmem:[%s347 + $0x160] sm:$0xff] %v2584
        %2729 = vst [vmem:[%s347 + $0x168] sm:$0xff] %v2585
        %2730 = vst [vmem:[%s347 + $0x170] sm:$0xff] %v2586
        %2731 = vst [vmem:[%s347 + $0x178] sm:$0xff] %v2587
        %2732 = vst [vmem:[%s347 + $0x180] sm:$0xff] %v2588
        %2733 = vst [vmem:[%s347 + $0x188] sm:$0xff] %v2589
        %2734 = vst [vmem:[%s347 + $0x190] sm:$0xff] %v2590
        %2735 = vst [vmem:[%s347 + $0x198] sm:$0xff] %v2591
        %2736 = vst [vmem:[%s347 + $0x1a0] sm:$0xff] %v2592
        %2737 = vst [vmem:[%s347 + $0x1a8] sm:$0xff] %v2593
        %2738 = vst [vmem:[%s347 + $0x1b0] sm:$0xff] %v2594
        %2739 = vst [vmem:[%s347 + $0x1b8] sm:$0xff] %v2595
        %2740 = vst [vmem:[%s347 + $0x1c0] sm:$0xff] %v2596
        %2741 = vst [vmem:[%s347 + $0x1c8] sm:$0xff] %v2597
        %2742 = vst [vmem:[%s347 + $0x1d0] sm:$0xff] %v2598
        %2743 = vst [vmem:[%s347 + $0x1d8] sm:$0xff] %v2599
        %2744 = vst [vmem:[%s347 + $0x1e0] sm:$0xff] %v2600
        %2745 = vst [vmem:[%s347 + $0x1e8] sm:$0xff] %v2601
        %2746 = vst [vmem:[%s347 + $0x1f0] sm:$0xff] %v2602
        %2747 = vst [vmem:[%s347 + $0x1f8] sm:$0xff] %v2603
        %2748 = vst [vmem:[%s347 + $0x200] sm:$0xff] %v2604
        %2749 = vst [vmem:[%s347 + $0x208] sm:$0xff] %v2605
        %2750 = vst [vmem:[%s347 + $0x210] sm:$0xff] %v2606
        %2751 = vst [vmem:[%s347 + $0x218] sm:$0xff] %v2607
        %2752 = vst [vmem:[%s347 + $0x220] sm:$0xff] %v2608
        %2753 = vst [vmem:[%s347 + $0x228] sm:$0xff] %v2609
        %2754 = vst [vmem:[%s347 + $0x230] sm:$0xff] %v2610
        %2755 = vst [vmem:[%s347 + $0x238] sm:$0xff] %v2611
        %2756 = vst [vmem:[%s347 + $0x240] sm:$0xff] %v2612
        %2757 = vst [vmem:[%s347 + $0x248] sm:$0xff] %v2613
        %2758 = vst [vmem:[%s347 + $0x250] sm:$0xff] %v2614
        %2759 = vst [vmem:[%s347 + $0x258] sm:$0xff] %v2615
        %2760 = vst [vmem:[%s347 + $0x260] sm:$0xff] %v2616
        %2761 = vst [vmem:[%s347 + $0x268] sm:$0xff] %v2617
        %2762 = vst [vmem:[%s347 + $0x270] sm:$0xff] %v2618
        %2763 = vst [vmem:[%s347 + $0x278] sm:$0xff] %v2619
        %2764 = vst [vmem:[%s347 + $0x280] sm:$0xff] %v2620
        %2765 = vst [vmem:[%s347 + $0x288] sm:$0xff] %v2621
        %2766 = vst [vmem:[%s347 + $0x290] sm:$0xff] %v2622
        %2767 = vst [vmem:[%s347 + $0x298] sm:$0xff] %v2623
        %2768 = vst [vmem:[%s347 + $0x2a0] sm:$0xff] %v2624
        %2769 = vst [vmem:[%s347 + $0x2a8] sm:$0xff] %v2625
        %2770 = vst [vmem:[%s347 + $0x2b0] sm:$0xff] %v2626
        %2771 = vst [vmem:[%s347 + $0x2b8] sm:$0xff] %v2627
        %2772 = vst [vmem:[%s347 + $0x2c0] sm:$0xff] %v2628
        %2773 = vst [vmem:[%s347 + $0x2c8] sm:$0xff] %v2629
        %2774 = vst [vmem:[%s347 + $0x2d0] sm:$0xff] %v2630
        %2775 = vst [vmem:[%s347 + $0x2d8] sm:$0xff] %v2631
        %2776 = vst [vmem:[%s347 + $0x2e0] sm:$0xff] %v2632
        %2777 = vst [vmem:[%s347 + $0x2e8] sm:$0xff] %v2633
        %2778 = vst [vmem:[%s347 + $0x2f0] sm:$0xff] %v2634
        %2779 = vst [vmem:[%s347 + $0x2f8] sm:$0xff] %v2635
        %2780 = vst [vmem:[%s347 + $0x300] sm:$0xff] %v2636
        %2781 = vst [vmem:[%s347 + $0x308] sm:$0xff] %v2637
        %2782 = vst [vmem:[%s347 + $0x310] sm:$0xff] %v2638
        %2783 = vst [vmem:[%s347 + $0x318] sm:$0xff] %v2639
        %2784 = vst [vmem:[%s347 + $0x320] sm:$0xff] %v2640
        %2785 = vst [vmem:[%s347 + $0x328] sm:$0xff] %v2641
        %2786 = vst [vmem:[%s347 + $0x330] sm:$0xff] %v2642
        %2787 = vst [vmem:[%s347 + $0x338] sm:$0xff] %v2643
        %2788 = vst [vmem:[%s347 + $0x340] sm:$0xff] %v2644
        %2789 = vst [vmem:[%s347 + $0x348] sm:$0xff] %v2645
        %2790 = vst [vmem:[%s347 + $0x350] sm:$0xff] %v2646
        %2791 = vst [vmem:[%s347 + $0x358] sm:$0xff] %v2647
        %2792 = vst [vmem:[%s347 + $0x360] sm:$0xff] %v2648
        %2793 = vst [vmem:[%s347 + $0x368] sm:$0xff] %v2649
        %2794 = vst [vmem:[%s347 + $0x370] sm:$0xff] %v2650
        %2795 = vst [vmem:[%s347 + $0x378] sm:$0xff] %v2651
        %2796 = vst [vmem:[%s347 + $0x380] sm:$0xff] %v2652
        %2797 = vst [vmem:[%s347 + $0x388] sm:$0xff] %v2653
        %2798 = vst [vmem:[%s347 + $0x390] sm:$0xff] %v2654
        %2799 = vst [vmem:[%s347 + $0x398] sm:$0xff] %v2655
        %2800 = vst [vmem:[%s347 + $0x3a0] sm:$0xff] %v2656
        %2801 = vst [vmem:[%s347 + $0x3a8] sm:$0xff] %v2657
        %2802 = vst [vmem:[%s347 + $0x3b0] sm:$0xff] %v2658
        %2803 = vst [vmem:[%s347 + $0x3b8] sm:$0xff] %v2659
        %2804 = vst [vmem:[%s347 + $0x3c0] sm:$0xff] %v2660
        %2805 = vst [vmem:[%s347 + $0x3c8] sm:$0xff] %v2661
        %2806 = vst [vmem:[%s347 + $0x3d0] sm:$0xff] %v2662
        %2807 = vst [vmem:[%s347 + $0x3d8] sm:$0xff] %v2663
        %2808 = vst [vmem:[%s347 + $0x3e0] sm:$0xff] %v2664
        %2809 = vst [vmem:[%s347 + $0x3e8] sm:$0xff] %v2665
        %2810 = vst [vmem:[%s347 + $0x3f0] sm:$0xff] %v2666
        %2811 = vst [vmem:[%s347 + $0x3f8] sm:$0xff] %v2667
        %2812 = vst [vmem:[%s347 + $0x400] sm:$0xff] %v2668
        %2813 = vst [vmem:[%s347 + $0x408] sm:$0xff] %v2669
        %2814 = vst [vmem:[%s347 + $0x410] sm:$0xff] %v2670
        %2815 = vst [vmem:[%s347 + $0x418] sm:$0xff] %v2671
        %2816 = vst [vmem:[%s347 + $0x420] sm:$0xff] %v2672
        %2817 = vst [vmem:[%s347 + $0x428] sm:$0xff] %v2673
        %2818 = vst [vmem:[%s347 + $0x430] sm:$0xff] %v2674
        %2819 = vst [vmem:[%s347 + $0x438] sm:$0xff] %v2675
        %2820 = vst [vmem:[%s347 + $0x440] sm:$0xff] %v2676
        %2821 = vst [vmem:[%s347 + $0x448] sm:$0xff] %v2677
        %2822 = vst [vmem:[%s347 + $0x450] sm:$0xff] %v2678
        %2823 = vst [vmem:[%s347 + $0x458] sm:$0xff] %v2679
        %2824 = vst [vmem:[%s347 + $0x460] sm:$0xff] %v2680
        %2825 = vst [vmem:[%s347 + $0x468] sm:$0xff] %v2681
        %2826 = vst [vmem:[%s347 + $0x470] sm:$0xff] %v2682
        %2827 = vst [vmem:[%s347 + $0x478] sm:$0xff] %v2683
        %s2828 = sand.u32 %s154, 1
        %s2829 = scalar_lea.sflag [#allocation4], %s2828
        %s2830 = sand.u32 %s154, 1
        %s2831 = smul.addr %s2830, 1152
        %s2832 = scalar_lea.vmem [#allocation11], %s2831
        // Predicated region
        $region61: #{tpu_custom_call.1} parent=39 // pred_check
          %p2833 = pneg %p164
        $region62: #{tpu_custom_call.1} parent=39 // pred_check_branch
          %2835 = sbr.rel (%p2833) target = $region64
        $region63: #{tpu_custom_call.1} parent=39 // pred_region
          %s2836 = smul.u32 24, %s26
          %s2838 = ssub.s32 18432, 18432
          %2839 = vsyncadd %s2829, %s2838
          %s2840 = smul.addr %s2836, 6
          %s2841 = smul.addr %s2840, 128
          %s2842 = scalar_lea.hbm %s5, %s2841
          %s2843 = sshll.u32 %s2832, 4
          %s2844 = int_to_ptr.vmem [resolvable:$true] %s2843
          %2849 = dma.vmem_to_hbm [thread:$0]  %s2844, 18432, %s2842, %s2829, 768, 768, 48
        $region64: #{tpu_custom_call.1} parent=39 // pred_fallthru
          _
      $region40: #{tpu_custom_call.1} parent=5 // pred_fallthru
        _
      %p2850 = scmp.le.s32.totalorder 2, %s21
      // Predicated region
      $region65: #{tpu_custom_call.1} parent=5 // pred_check
        %p2851 = pneg %p2850
      $region66: #{tpu_custom_call.1} parent=5 // pred_check_branch
        %2853 = sbr.rel (%p2851) target = $region68
      $region67: #{tpu_custom_call.1} parent=5 // pred_region
        %s2854 = ssub.s32 %s21, 2
        // Predicated region
        $region69: #{tpu_custom_call.1} parent=67 // pred_check
          %p2855 = pneg %p170
        $region70: #{tpu_custom_call.1} parent=67 // pred_check_branch
          %2857 = sbr.rel (%p2855) target = $region72
        $region71: #{tpu_custom_call.1} parent=67 // pred_region
          %s2858 = sand.u32 %s155, 1
          %s2859 = scalar_lea.sflag [#allocation4], %s2858
          %s2860 = sand.u32 %s155, 1
          %s2861 = smul.addr %s2860, 1152
          %s2862 = scalar_lea.vmem [#allocation11], %s2861
          %2863 = dma.done %s2859, 18432
        $region72: #{tpu_custom_call.1} parent=67 // pred_fallthru
          _
      $region68: #{tpu_custom_call.1} parent=5 // pred_fallthru
        _
    $region6: #{tpu_custom_call.1} parent=1 // loop_footer
      %s25 = sadd.s32 1, %s21
    $region7: #{tpu_custom_call.1} parent=1 // loop_footer_branch
      %20 = sbr.rel target = $region3
    $region8: #{tpu_custom_call.1} parent=1 // loop_exit
      _
    %2864 = vsyncpa [#allocation3], 1
    %s2865 = scalar_lea.sflag [#allocation3], 1
    %2866 = vsyncpa %s2865, 1
    %2867 = vsyncpa [#allocation6], 1
    %s2868 = scalar_lea.sflag [#allocation6], 1
    %2869 = vsyncpa %s2868, 1
    %2870 = vsyncpa [#allocation9], 1
    %2871 = vsyncpa [#allocation4], 1
    %s2872 = scalar_lea.sflag [#allocation4], 1
    %2873 = vsyncpa %s2872, 1

</llo_original>
